<compile_context>
chip_gen: v7x
topology: tpu7x:2x2x1
jax: 0.10.0
libtpu: 0.0.40
codegen_flags: <defaults>
</compile_context>

<pallas_src>
import math
from functools import partial

import jax
import jax.numpy as jnp
from jax.experimental import pallas as pl
from jax.experimental.pallas import tpu as pltpu

_SUBLANE = 8      # f32 sublane pack (second-to-last dim granularity)
_LANE = 128       # lane width (last dim granularity)


def _round_up(x, m):
    return ((x + m - 1) // m) * m


def _cdiv(a, b):
    return (a + b - 1) // b


def mlp_kernel(x_ref, w1_ref, b1_ref, w2_ref, b2_ref, w3_ref, b3_ref, o_ref):
    """Fused 3-layer MLP on one batch tile; all weights stay VMEM-resident."""
    hp = jax.lax.Precision.HIGHEST
    # Layer 1: (TB, G) @ (G, Np) -> (TB, Np), + bias, ReLU
    h = jnp.dot(x_ref[...], w1_ref[...], precision=hp,
                preferred_element_type=jnp.float32)
    h = jnp.maximum(h + b1_ref[...], 0.0)
    # Layer 2: (TB, Np) @ (Np, Np) -> (TB, Np), + bias, ReLU
    h = jnp.dot(h, w2_ref[...], precision=hp,
                preferred_element_type=jnp.float32)
    h = jnp.maximum(h + b2_ref[...], 0.0)
    # Head: (TB, Np) @ (Np, A) -> (TB, A) written back at its real width.
    out = jnp.dot(h, w3_ref[...], precision=hp,
                  preferred_element_type=jnp.float32)
    o_ref[...] = (out + b3_ref[...]).astype(o_ref.dtype)


def _batch_tiling(B, batch_tile):
    """Pick (TB, n_tiles).

    TB is a multiple of 8 (or equals B for a single block), padding waste is
    at most ~one sublane of slack, and large batches are split into >= 2 grid
    steps so v7x's second TensorCore participates.
    """
    n_tiles = _cdiv(B, batch_tile)
    if n_tiles == 1 and B >= 256:      # give v7x megacore >= 2 steps
        n_tiles = 2
    if n_tiles == 1:
        return B, 1                    # single full-batch block (any B legal)
    TB = _round_up(_cdiv(B, n_tiles), _SUBLANE)
    n_tiles = _cdiv(B, TB)             # TB rounding may shrink the tile count
    if n_tiles == 1:
        return B, 1
    return TB, n_tiles


@partial(jax.jit, static_argnames=("batch_tile",))
def agent_network_forward(x, params, *, batch_tile=2048):
    """x: [B, grid_size] f32. params: kernel-ready (hidden dim pre-padded) dict
    of [in, out] weights and (1, out) biases -- see pad_params_for_kernel."""
    w1, b1, w2, b2, w3, b3 = (
        params["w1"], params["b1"], params["w2"], params["b2"],
        params["w3"], params["b3"],
    )
    B, G = x.shape
    Np = w1.shape[1]          # (pre-padded) hidden width
    A = w3.shape[1]           # number of actions (4)

    TB, n_tiles = _batch_tiling(B, batch_tile)

    def resident(shape):      # same block every step -> stays VMEM-resident
        return pl.BlockSpec(shape, lambda i: (0, 0))

    return pl.pallas_call(
        mlp_kernel,
        out_shape=jax.ShapeDtypeStruct((B, A), jnp.float32),
        grid_spec=pltpu.PrefetchScalarGridSpec(
            num_scalar_prefetch=0,
            grid=(n_tiles,),
            in_specs=[
                pl.BlockSpec((TB, G), lambda i: (i, 0)),   # x streamed on batch
                resident((G, Np)), resident((1, Np)),
                resident((Np, Np)), resident((1, Np)),
                resident((Np, A)), resident((1, A)),
            ],
            out_specs=pl.BlockSpec((TB, A), lambda i: (i, 0)),
        ),
        compiler_params=pltpu.CompilerParams(
            dimension_semantics=("parallel",),
        ),
    )(x, w1, b1, w2, b2, w3, b3)


def init_params(key, grid_size, neurons, n_actions=4):
    """Deterministic init matching the PyTorch module:
       - weights: kaiming_uniform_(mode='fan_in', nonlinearity='relu')
                  -> U(-sqrt(6/fan_in), sqrt(6/fan_in))
       - biases:  PyTorch nn.Linear default U(-1/sqrt(fan_in), 1/sqrt(fan_in))
       Weights are returned transposed to [in, out] for the kernel."""
    dims = [(grid_size, neurons), (neurons, neurons), (neurons, n_actions)]
    params = {}
    for i, (fan_in, fan_out) in enumerate(dims, start=1):
        key, kw, kb = jax.random.split(key, 3)
        w_bound = math.sqrt(6.0 / fan_in)
        b_bound = 1.0 / math.sqrt(fan_in)
        params[f"w{i}"] = jax.random.uniform(
            kw, (fan_in, fan_out), jnp.float32, -w_bound, w_bound)
        params[f"b{i}"] = jax.random.uniform(
            kb, (1, fan_out), jnp.float32, -b_bound, b_bound)
    return params


def pad_params_for_kernel(params):
    """ONE-TIME zero-padding of the hidden dim to a lane multiple. Done at init
    / cached by the caller, never per forward call. Padding is inert math-wise."""
    w1, b1 = params["w1"], params["b1"]
    w2, b2 = params["w2"], params["b2"]
    w3, b3 = params["w3"], params["b3"]
    G, N = w1.shape
    A = w3.shape[1]
    Np = _round_up(N, _LANE)
    f32 = jnp.float32
    if Np == N:
        return {k: v.astype(f32) for k, v in params.items()}
    return {
        "w1": jnp.zeros((G, Np), f32).at[:, :N].set(w1),
        "b1": jnp.zeros((1, Np), f32).at[:, :N].set(b1),
        "w2": jnp.zeros((Np, Np), f32).at[:N, :N].set(w2),
        "b2": jnp.zeros((1, Np), f32).at[:, :N].set(b2),
        "w3": jnp.zeros((Np, A), f32).at[:N, :].set(w3),
        "b3": b3.astype(f32),
    }


def reference_forward(x, params):
    hp = jax.lax.Precision.HIGHEST
    h = jnp.maximum(
        jnp.dot(x, params["w1"], precision=hp,
                preferred_element_type=jnp.float32) + params["b1"], 0.0)
    h = jnp.maximum(
        jnp.dot(h, params["w2"], precision=hp,
                preferred_element_type=jnp.float32) + params["b2"], 0.0)
    return (jnp.dot(h, params["w3"], precision=hp,
                    preferred_element_type=jnp.float32) + params["b3"])


if __name__ == "__main__":
    # Small shapes matching the module defaults (grid_size=50, neurons=100).
    batch, grid_size, neurons = 8, 50, 100

    key = jax.random.PRNGKey(0)
    key, kx, kx2 = jax.random.split(key, 3)
    x = jax.random.normal(kx, (batch, grid_size), jnp.float32)

    params = init_params(key, grid_size, neurons)
    kernel_params = pad_params_for_kernel(params)     # one-time, cached

    # 1) Small batch: single full-batch block.
    out = agent_network_forward(x, kernel_params)
    out = jax.block_until_ready(out)
    ref = reference_forward(x, params)
    assert out.shape == (batch, 4), out.shape
    assert jnp.allclose(out, ref, atol=1e-4, rtol=1e-4), (
        float(jnp.max(jnp.abs(out - ref))))

    # 2) Larger batch: multi-tile grid (parallel axis), uneven last block.
    big_batch = 300
    x2 = jax.random.normal(kx2, (big_batch, grid_size), jnp.float32)
    out2 = agent_network_forward(x2, kernel_params, batch_tile=128)
    out2 = jax.block_until_ready(out2)
    ref2 = reference_forward(x2, params)
    assert out2.shape == (big_batch, 4), out2.shape
    assert jnp.allclose(out2, ref2, atol=1e-4, rtol=1e-4), (
        float(jnp.max(jnp.abs(out2 - ref2))))

    print("KERNEL_OK")
</pallas_src>

<mosaic_0001>
module attributes {stable_mosaic.version = 11 : i64} {
  func.func @mlp_kernel(%arg0: i32, %arg1: memref<8x50xf32, #tpu.memory_space<vmem>>, %arg2: memref<50x128xf32, #tpu.memory_space<vmem>>, %arg3: memref<1x128xf32, #tpu.memory_space<vmem>>, %arg4: memref<128x128xf32, #tpu.memory_space<vmem>>, %arg5: memref<1x128xf32, #tpu.memory_space<vmem>>, %arg6: memref<128x4xf32, #tpu.memory_space<vmem>>, %arg7: memref<1x4xf32, #tpu.memory_space<vmem>>, %arg8: memref<8x4xf32, #tpu.memory_space<vmem>>) attributes {dimension_semantics = [#tpu.dimension_semantics<parallel>], iteration_bounds = array<i64: 1>, scalar_prefetch = 0 : i64, scratch_operands = 0 : i64, tpu.core_type = #tpu.core_type<tc>, window_params = [{transform_indices = @transform_0, window_bounds = array<i64: 8, 50>}, {pipeline_mode = #tpu.pipeline_mode<synchronous>, transform_indices = @transform_1, window_bounds = array<i64: 50, 128>}, {pipeline_mode = #tpu.pipeline_mode<synchronous>, transform_indices = @transform_2, window_bounds = array<i64: 1, 128>}, {pipeline_mode = #tpu.pipeline_mode<synchronous>, transform_indices = @transform_3, window_bounds = array<i64: 128, 128>}, {pipeline_mode = #tpu.pipeline_mode<synchronous>, transform_indices = @transform_4, window_bounds = array<i64: 1, 128>}, {pipeline_mode = #tpu.pipeline_mode<synchronous>, transform_indices = @transform_5, window_bounds = array<i64: 128, 4>}, {pipeline_mode = #tpu.pipeline_mode<synchronous>, transform_indices = @transform_6, window_bounds = array<i64: 1, 4>}, {transform_indices = @transform_7, window_bounds = array<i64: 8, 4>}]} {
    %c0 = arith.constant 0 : index
    %c0_0 = arith.constant 0 : index
    %0 = vector.load %arg1[%c0, %c0_0] : memref<8x50xf32, #tpu.memory_space<vmem>>, vector<8x50xf32>
    %c0_1 = arith.constant 0 : index
    %c0_2 = arith.constant 0 : index
    %1 = vector.load %arg2[%c0_1, %c0_2] : memref<50x128xf32, #tpu.memory_space<vmem>>, vector<50x128xf32>
    %cst = arith.constant dense<0.000000e+00> : vector<8x128xf32>
    %2 = tpu.matmul %0, %1, %cst {dimension_numbers = #tpu.dot_dimension_numbers<[1], [0], [0], [1], [0, 0, 1, 1], [], []>, precision = #tpu.contract_precision<fp32>} : vector<8x50xf32>, vector<50x128xf32>, vector<8x128xf32> -> vector<8x128xf32>
    %c0_3 = arith.constant 0 : index
    %c0_4 = arith.constant 0 : index
    %3 = vector.load %arg3[%c0_3, %c0_4] : memref<1x128xf32, #tpu.memory_space<vmem>>, vector<1x128xf32>
    %4 = vector.broadcast %3 : vector<1x128xf32> to vector<8x128xf32>
    %5 = arith.addf %2, %4 : vector<8x128xf32>
    %cst_5 = arith.constant 0.000000e+00 : f32
    %6 = vector.broadcast %cst_5 : f32 to vector<8x128xf32>
    %7 = arith.maximumf %5, %6 : vector<8x128xf32>
    %c0_6 = arith.constant 0 : index
    %c0_7 = arith.constant 0 : index
    %8 = vector.load %arg4[%c0_6, %c0_7] : memref<128x128xf32, #tpu.memory_space<vmem>>, vector<128x128xf32>
    %cst_8 = arith.constant dense<0.000000e+00> : vector<8x128xf32>
    %9 = tpu.matmul %7, %8, %cst_8 {dimension_numbers = #tpu.dot_dimension_numbers<[1], [0], [0], [1], [0, 0, 1, 1], [], []>, precision = #tpu.contract_precision<fp32>} : vector<8x128xf32>, vector<128x128xf32>, vector<8x128xf32> -> vector<8x128xf32>
    %c0_9 = arith.constant 0 : index
    %c0_10 = arith.constant 0 : index
    %10 = vector.load %arg5[%c0_9, %c0_10] : memref<1x128xf32, #tpu.memory_space<vmem>>, vector<1x128xf32>
    %11 = vector.broadcast %10 : vector<1x128xf32> to vector<8x128xf32>
    %12 = arith.addf %9, %11 : vector<8x128xf32>
    %cst_11 = arith.constant 0.000000e+00 : f32
    %13 = vector.broadcast %cst_11 : f32 to vector<8x128xf32>
    %14 = arith.maximumf %12, %13 : vector<8x128xf32>
    %c0_12 = arith.constant 0 : index
    %c0_13 = arith.constant 0 : index
    %15 = vector.load %arg6[%c0_12, %c0_13] : memref<128x4xf32, #tpu.memory_space<vmem>>, vector<128x4xf32>
    %cst_14 = arith.constant dense<0.000000e+00> : vector<8x4xf32>
    %16 = tpu.matmul %14, %15, %cst_14 {dimension_numbers = #tpu.dot_dimension_numbers<[1], [0], [0], [1], [0, 0, 1, 1], [], []>, precision = #tpu.contract_precision<fp32>} : vector<8x128xf32>, vector<128x4xf32>, vector<8x4xf32> -> vector<8x4xf32>
    %c0_15 = arith.constant 0 : index
    %c0_16 = arith.constant 0 : index
    %17 = vector.load %arg7[%c0_15, %c0_16] : memref<1x4xf32, #tpu.memory_space<vmem>>, vector<1x4xf32>
    %18 = vector.broadcast %17 : vector<1x4xf32> to vector<8x4xf32>
    %19 = arith.addf %16, %18 : vector<8x4xf32>
    %c0_17 = arith.constant 0 : index
    %c0_18 = arith.constant 0 : index
    %20 = vector.load %arg8[%c0_17, %c0_18] : memref<8x4xf32, #tpu.memory_space<vmem>>, vector<8x4xf32>
    tpu.vector_store %arg8[%c0_17, %c0_18], %19 {strides = array<i32>} : memref<8x4xf32, #tpu.memory_space<vmem>>, vector<8x4xf32>,
    return
  }
  func.func @transform_0(%arg0: i32) -> (i32, i32) {
    %c0_i32 = arith.constant 0 : i32
    %c0_i32_0 = arith.constant 0 : i32
    return %arg0, %c0_i32 : i32, i32
  }
  func.func @transform_1(%arg0: i32) -> (i32, i32) {
    %c0_i32 = arith.constant 0 : i32
    %c0_i32_0 = arith.constant 0 : i32
    %c0_i32_1 = arith.constant 0 : i32
    return %c0_i32, %c0_i32_0 : i32, i32
  }
  func.func @transform_2(%arg0: i32) -> (i32, i32) {
    %c0_i32 = arith.constant 0 : i32
    %c0_i32_0 = arith.constant 0 : i32
    %c0_i32_1 = arith.constant 0 : i32
    return %c0_i32, %c0_i32_0 : i32, i32
  }
  func.func @transform_3(%arg0: i32) -> (i32, i32) {
    %c0_i32 = arith.constant 0 : i32
    %c0_i32_0 = arith.constant 0 : i32
    %c0_i32_1 = arith.constant 0 : i32
    return %c0_i32, %c0_i32_0 : i32, i32
  }
  func.func @transform_4(%arg0: i32) -> (i32, i32) {
    %c0_i32 = arith.constant 0 : i32
    %c0_i32_0 = arith.constant 0 : i32
    %c0_i32_1 = arith.constant 0 : i32
    return %c0_i32, %c0_i32_0 : i32, i32
  }
  func.func @transform_5(%arg0: i32) -> (i32, i32) {
    %c0_i32 = arith.constant 0 : i32
    %c0_i32_0 = arith.constant 0 : i32
    %c0_i32_1 = arith.constant 0 : i32
    return %c0_i32, %c0_i32_0 : i32, i32
  }
  func.func @transform_6(%arg0: i32) -> (i32, i32) {
    %c0_i32 = arith.constant 0 : i32
    %c0_i32_0 = arith.constant 0 : i32
    %c0_i32_1 = arith.constant 0 : i32
    return %c0_i32, %c0_i32_0 : i32, i32
  }
  func.func @transform_7(%arg0: i32) -> (i32, i32) {
    %c0_i32 = arith.constant 0 : i32
    %c0_i32_0 = arith.constant 0 : i32
    return %arg0, %c0_i32 : i32, i32
  }
}

</mosaic_0001>

<llo_original>
// kernel: agent_network_forward.1
$region0: #{agent_network_forward.1}
  #allocation0 [shape = 'u32[]', space=smem, size = 0x4, offset = 0x4, fixed_abs, tag = 'smem constant byte address 0x4 - core index']
  #allocation1 [shape = 'u32[144,128]{1,0:T(1,128)}', space=vmem, size = 0x12000, scoped, tag = 'internal scratch']
  %s0 = inlined_call_operand.vmem [shape: f32[8,50], index: 0, kind: input, shape index: {}]
  %s1 = inlined_call_operand.hbm [shape: f32[50,128], index: 1, kind: input, shape index: {}]
  %s2 = inlined_call_operand.vmem [shape: f32[1,128], index: 2, kind: input, shape index: {}]
  %s3 = inlined_call_operand.vmem [shape: f32[128,128], index: 3, kind: input, shape index: {}]
  %s4 = inlined_call_operand.vmem [shape: f32[1,128], index: 4, kind: input, shape index: {}]
  %s5 = inlined_call_operand.vmem [shape: f32[128,4], index: 5, kind: input, shape index: {}]
  %s6 = inlined_call_operand.vmem [shape: f32[1,4], index: 6, kind: input, shape index: {}]
  %s7 = inlined_call_operand.vmem [shape: f32[8,4], index: 7, kind: output, shape index: {}]
  %s8 = sld [smem:[#allocation0]]
  $region42: #{agent_network_forward.1} parent=0
    _
  %s10 = ssub.s32 1, %s8
  %s11 = scalar_select 0, %s10, %s8
  $region1: #{agent_network_forward.1} parent=0
    #allocation2 [shape = 'u8[28672]{0}', space=vmem, size = 0x7000, scoped, tag = 'input window, operand 1, single buffered']
    #allocation3 [shape = 's32[1]{0}', space=sflag, size = 0x4, scoped, tag = 'scoped memory for agent_network_forward.1']
    %12 = vsyncpa [#allocation3], 0
    // Predicated region
    $region2: #{agent_network_forward.1} parent=1 // pred_check
      _
    $region3: #{agent_network_forward.1} parent=1 // pred_check_branch
      %14 = sbr.rel (0) target = $region5
    $region4: #{agent_network_forward.1} parent=1 // pred_region
      _
    $region5: #{agent_network_forward.1} parent=1 // pred_fallthru
      _
    // Predicated region
    $region6: #{agent_network_forward.1} parent=1 // pred_check
      _
    $region7: #{agent_network_forward.1} parent=1 // pred_check_branch
      %16 = sbr.rel (0) target = $region9
    $region8: #{agent_network_forward.1} parent=1 // pred_region
      %s18 = ssub.s32 896, 896
      %19 = vsyncadd [#allocation3], %s18
      %s20 = sshll.u32 [#allocation2], 4
      %s21 = int_to_ptr.vmem [resolvable:$true] %s20
      %26 = dma.hbm_to_vmem [thread:$0]  %s1, 896, %s21, [#allocation3], 128, 128, 8
    $region9: #{agent_network_forward.1} parent=1 // pred_fallthru
      _
    // Predicated region
    $region10: #{agent_network_forward.1} parent=1 // pred_check
      _
    $region11: #{agent_network_forward.1} parent=1 // pred_check_branch
      %28 = sbr.rel (0) target = $region13
    $region12: #{agent_network_forward.1} parent=1 // pred_region
      _
    $region13: #{agent_network_forward.1} parent=1 // pred_fallthru
      _
    // Predicated region
    $region14: #{agent_network_forward.1} parent=1 // pred_check
      _
    $region15: #{agent_network_forward.1} parent=1 // pred_check_branch
      %30 = sbr.rel (0) target = $region17
    $region16: #{agent_network_forward.1} parent=1 // pred_region
      _
    $region17: #{agent_network_forward.1} parent=1 // pred_fallthru
      _
    // Predicated region
    $region18: #{agent_network_forward.1} parent=1 // pred_check
      _
    $region19: #{agent_network_forward.1} parent=1 // pred_check_branch
      %32 = sbr.rel (0) target = $region21
    $region20: #{agent_network_forward.1} parent=1 // pred_region
      _
    $region21: #{agent_network_forward.1} parent=1 // pred_fallthru
      _
    // Predicated region
    $region22: #{agent_network_forward.1} parent=1 // pred_check
      _
    $region23: #{agent_network_forward.1} parent=1 // pred_check_branch
      %34 = sbr.rel (0) target = $region25
    $region24: #{agent_network_forward.1} parent=1 // pred_region
      _
    $region25: #{agent_network_forward.1} parent=1 // pred_fallthru
      _
    // Predicated region
    $region26: #{agent_network_forward.1} parent=1 // pred_check
      _
    $region27: #{agent_network_forward.1} parent=1 // pred_check_branch
      %36 = sbr.rel (0) target = $region29
    $region28: #{agent_network_forward.1} parent=1 // pred_region
      _
    $region29: #{agent_network_forward.1} parent=1 // pred_fallthru
      _
    // Predicated region
    $region30: #{agent_network_forward.1} parent=1 // pred_check
      _
    $region31: #{agent_network_forward.1} parent=1 // pred_check_branch
      %38 = sbr.rel (0) target = $region33
    $region32: #{agent_network_forward.1} parent=1 // pred_region
      %39 = dma.done [#allocation3], 896
    $region33: #{agent_network_forward.1} parent=1 // pred_fallthru
      _
    %v40 = vld [vmem:[%s0] sm:$0xff]
    %v41 = vld [vmem:[#allocation2] sm:$0xff]
    %v42 = vld [vmem:[#allocation2 + $0x8] sm:$0xff]
    %v43 = vld [vmem:[#allocation2 + $0x10] sm:$0xff]
    %v44 = vld [vmem:[#allocation2 + $0x18] sm:$0xff]
    %v45 = vld [vmem:[#allocation2 + $0x20] sm:$0xff]
    %v46 = vld [vmem:[#allocation2 + $0x28] sm:$0xff]
    %v47 = vld [vmem:[#allocation2 + $0x30] sm:$0x3]
    %v48 = vld [vmem:[%s2] sm:$0x1]
    %v50 = vlaneseq
    %v51 = vshrl.u32 %v50, 7
    %v52 = vsub.s32 0, %v51
    %v53 = vrot.slane %v48, %v52
    %vm55 = vcmask 408576
    %v57 = vsel %vm55, %v40, 0
    %vm59 = vcmask 1041408
    %v61 = vsel %vm59, %v47, 0
    %63 = vmatprep.subr.mxu0 0.0
    %v64 = vand.u32 %v41, 4294901760
    %65 = vmatpush1.msra.mxu0 %v64
    %66 = vmatprep.subr.mxu0 0.0
    %v67 = vand.u32 %v42, 4294901760
    %68 = vmatpush1.msra.mxu0 %v67
    %69 = vmatprep.subr.mxu0 0.0
    %v70 = vand.u32 %v43, 4294901760
    %71 = vmatpush1.msra.mxu0 %v70
    %72 = vmatprep.subr.mxu0 0.0
    %v73 = vand.u32 %v44, 4294901760
    %74 = vmatpush1.msra.mxu0 %v73
    %75 = vmatprep.subr.mxu0 0.0
    %v76 = vand.u32 %v45, 4294901760
    %77 = vmatpush1.msra.mxu0 %v76
    %78 = vmatprep.subr.mxu0 0.0
    %v79 = vand.u32 %v46, 4294901760
    %80 = vmatpush1.msra.mxu0 %v79
    %81 = vmatprep.subr.mxu0 0.0
    %v82 = vand.u32 %v61, 4294901760
    %83 = vmatpush1.msra.mxu0 %v82
    %84 = vmatprep.subr.mxu0 0.0
    %85 = vmatpush1.msra.mxu0 0.0
    %86 = vmatprep.subr.mxu0 0.0
    %87 = vmatpush1.msra.mxu0 0.0
    %88 = vmatprep.subr.mxu0 0.0
    %89 = vmatpush1.msra.mxu0 0.0
    %90 = vmatprep.subr.mxu0 0.0
    %91 = vmatpush1.msra.mxu0 0.0
    %92 = vmatprep.subr.mxu0 0.0
    %93 = vmatpush1.msra.mxu0 0.0
    %94 = vmatprep.subr.mxu0 0.0
    %95 = vmatpush1.msra.mxu0 0.0
    %96 = vmatprep.subr.mxu0 0.0
    %97 = vmatpush1.msra.mxu0 0.0
    %98 = vmatprep.subr.mxu0 0.0
    %99 = vmatpush1.msra.mxu0 0.0
    %100 = vmatprep.subr.mxu0 0.0
    %101 = vmatpush1.msra.mxu0 0.0
    %102 = vmatprep.subr.mxu0 0.0
    %103 = vmatpush1.msra.mxu0 0.0
    %104 = vmatprep.subr.mxu0 0.0
    %105 = vmatpush1.msra.mxu0 0.0
    %106 = vmatprep.subr.mxu0 0.0
    %107 = vmatpush1.msra.mxu0 0.0
    %108 = vmatprep.subr.mxu0 0.0
    %109 = vmatpush1.msra.mxu0 0.0
    %110 = vmatprep.subr.mxu0 0.0
    %111 = vmatpush1.msra.mxu0 0.0
    %112 = vmatprep.subr.mxu0 0.0
    %113 = vmatpush1.msra.mxu0 0.0
    %114 = vmatprep.subr.mxu0 0.0
    %115 = vmatpush1.msra.mxu0 0.0
    %116 = vmatprep.subr.mxu0 0.0
    %117 = vmatpush1.msra.mxu0 0.0
    %118 = vmatprep.subr.mxu0 0.0
    %119 = vmatpush1.msra.mxu0 0.0
    %120 = vmatprep.subr.mxu0 0.0
    %121 = vmatpush1.msra.mxu0 0.0
    %122 = vmatprep.subr.mxu0 0.0
    %123 = vmatpush1.msra.mxu0 0.0
    %124 = vmatprep.subr.mxu0 0.0
    %125 = vmatpush1.msra.mxu0 0.0
    %126 = vmatprep.subr.mxu0 0.0
    %127 = vmatpush1.msra.mxu0 0.0
    %128 = vmatprep.subr.mxu0 0.0
    %129 = vmatpush1.msra.mxu0 0.0
    %130 = vmatprep.subr.mxu0 0.0
    %131 = vmatpush1.msra.mxu0 0.0
    %132 = vmatprep.subr.mxu0 0.0
    %133 = vmatpush1.msra.mxu0 0.0
    %134 = vmatprep.mubr.f32.mxu0 0.0
    %v135 = vand.u32 %v57, 4294901760
    %v136 = vsub.f32 %v57, %v135
    %v137 = vand.u32 %v136, 4294901760
    %v138 = vsub.f32 %v136, %v137
    %v139 = vand.u32 %v138, 4294901760
    %140 = vmatmul.mubr.f32.gmra.mrb[0].mxu0 %v139
    %v141 = vpop.f32.mrb[0].mxu0
    %v142 = vadd.f32 %v53, %v141
    %v143 = vpop.f32.mrb[0].mxu0
    %144 = vdwg.mxu0
    %145 = vmatprep.subr.mxu0 0.0
    %v146 = vand.u32 %v41, 4294901760
    %v147 = vsub.f32 %v41, %v146
    %v148 = vand.u32 %v147, 4294901760
    %v149 = vsub.f32 %v147, %v148
    %v150 = vand.u32 %v149, 4294901760
    %151 = vmatpush1.msra.mxu0 %v150
    %152 = vmatprep.subr.mxu0 0.0
    %v153 = vand.u32 %v42, 4294901760
    %v154 = vsub.f32 %v42, %v153
    %v155 = vand.u32 %v154, 4294901760
    %v156 = vsub.f32 %v154, %v155
    %v157 = vand.u32 %v156, 4294901760
    %158 = vmatpush1.msra.mxu0 %v157
    %159 = vmatprep.subr.mxu0 0.0
    %v160 = vand.u32 %v43, 4294901760
    %v161 = vsub.f32 %v43, %v160
    %v162 = vand.u32 %v161, 4294901760
    %v163 = vsub.f32 %v161, %v162
    %v164 = vand.u32 %v163, 4294901760
    %165 = vmatpush1.msra.mxu0 %v164
    %166 = vmatprep.subr.mxu0 0.0
    %v167 = vand.u32 %v44, 4294901760
    %v168 = vsub.f32 %v44, %v167
    %v169 = vand.u32 %v168, 4294901760
    %v170 = vsub.f32 %v168, %v169
    %v171 = vand.u32 %v170, 4294901760
    %172 = vmatpush1.msra.mxu0 %v171
    %173 = vmatprep.subr.mxu0 0.0
    %v174 = vand.u32 %v45, 4294901760
    %v175 = vsub.f32 %v45, %v174
    %v176 = vand.u32 %v175, 4294901760
    %v177 = vsub.f32 %v175, %v176
    %v178 = vand.u32 %v177, 4294901760
    %179 = vmatpush1.msra.mxu0 %v178
    %180 = vmatprep.subr.mxu0 0.0
    %v181 = vand.u32 %v46, 4294901760
    %v182 = vsub.f32 %v46, %v181
    %v183 = vand.u32 %v182, 4294901760
    %v184 = vsub.f32 %v182, %v183
    %v185 = vand.u32 %v184, 4294901760
    %186 = vmatpush1.msra.mxu0 %v185
    %187 = vmatprep.subr.mxu0 0.0
    %v188 = vand.u32 %v61, 4294901760
    %v189 = vsub.f32 %v61, %v188
    %v190 = vand.u32 %v189, 4294901760
    %v191 = vsub.f32 %v189, %v190
    %v192 = vand.u32 %v191, 4294901760
    %193 = vmatpush1.msra.mxu0 %v192
    %194 = vmatprep.subr.mxu0 0.0
    %195 = vmatpush1.msra.mxu0 0.0
    %196 = vmatprep.subr.mxu0 0.0
    %197 = vmatpush1.msra.mxu0 0.0
    %198 = vmatprep.subr.mxu0 0.0
    %199 = vmatpush1.msra.mxu0 0.0
    %200 = vmatprep.subr.mxu0 0.0
    %201 = vmatpush1.msra.mxu0 0.0
    %202 = vmatprep.subr.mxu0 0.0
    %203 = vmatpush1.msra.mxu0 0.0
    %204 = vmatprep.subr.mxu0 0.0
    %205 = vmatpush1.msra.mxu0 0.0
    %206 = vmatprep.subr.mxu0 0.0
    %207 = vmatpush1.msra.mxu0 0.0
    %208 = vmatprep.subr.mxu0 0.0
    %209 = vmatpush1.msra.mxu0 0.0
    %210 = vmatprep.subr.mxu0 0.0
    %211 = vmatpush1.msra.mxu0 0.0
    %212 = vmatprep.subr.mxu0 0.0
    %213 = vmatpush1.msra.mxu0 0.0
    %214 = vmatprep.subr.mxu0 0.0
    %215 = vmatpush1.msra.mxu0 0.0
    %216 = vmatprep.subr.mxu0 0.0
    %217 = vmatpush1.msra.mxu0 0.0
    %218 = vmatprep.subr.mxu0 0.0
    %219 = vmatpush1.msra.mxu0 0.0
    %220 = vmatprep.subr.mxu0 0.0
    %221 = vmatpush1.msra.mxu0 0.0
    %222 = vmatprep.subr.mxu0 0.0
    %223 = vmatpush1.msra.mxu0 0.0
    %224 = vmatprep.subr.mxu0 0.0
    %225 = vmatpush1.msra.mxu0 0.0
    %226 = vmatprep.subr.mxu0 0.0
    %227 = vmatpush1.msra.mxu0 0.0
    %228 = vmatprep.subr.mxu0 0.0
    %229 = vmatpush1.msra.mxu0 0.0
    %230 = vmatprep.subr.mxu0 0.0
    %231 = vmatpush1.msra.mxu0 0.0
    %232 = vmatprep.subr.mxu0 0.0
    %233 = vmatpush1.msra.mxu0 0.0
    %234 = vmatprep.subr.mxu0 0.0
    %235 = vmatpush1.msra.mxu0 0.0
    %236 = vmatprep.subr.mxu0 0.0
    %237 = vmatpush1.msra.mxu0 0.0
    %238 = vmatprep.subr.mxu0 0.0
    %239 = vmatpush1.msra.mxu0 0.0
    %240 = vmatprep.subr.mxu0 0.0
    %241 = vmatpush1.msra.mxu0 0.0
    %242 = vmatprep.subr.mxu0 0.0
    %243 = vmatpush1.msra.mxu0 0.0
    %244 = vmatprep.mubr.f32.mxu0 0.0
    %v245 = vand.u32 %v57, 4294901760
    %246 = vmatmul.mubr.f32.gmra.mrb[0].mxu0 %v245
    %v247 = vpop.f32.mrb[0].mxu0
    %v248 = vadd.f32 %v142, %v247
    %v249 = vpop.f32.mrb[0].mxu0
    %250 = vdwg.mxu0
    %251 = vmatprep.subr.mxu0 0.0
    %v252 = vand.u32 %v41, 4294901760
    %v253 = vsub.f32 %v41, %v252
    %254 = vmatpush1.msra.mxu0 %v253
    %255 = vmatprep.subr.mxu0 0.0
    %v256 = vand.u32 %v42, 4294901760
    %v257 = vsub.f32 %v42, %v256
    %258 = vmatpush1.msra.mxu0 %v257
    %259 = vmatprep.subr.mxu0 0.0
    %v260 = vand.u32 %v43, 4294901760
    %v261 = vsub.f32 %v43, %v260
    %262 = vmatpush1.msra.mxu0 %v261
    %263 = vmatprep.subr.mxu0 0.0
    %v264 = vand.u32 %v44, 4294901760
    %v265 = vsub.f32 %v44, %v264
    %266 = vmatpush1.msra.mxu0 %v265
    %267 = vmatprep.subr.mxu0 0.0
    %v268 = vand.u32 %v45, 4294901760
    %v269 = vsub.f32 %v45, %v268
    %270 = vmatpush1.msra.mxu0 %v269
    %271 = vmatprep.subr.mxu0 0.0
    %v272 = vand.u32 %v46, 4294901760
    %v273 = vsub.f32 %v46, %v272
    %274 = vmatpush1.msra.mxu0 %v273
    %275 = vmatprep.subr.mxu0 0.0
    %v276 = vand.u32 %v61, 4294901760
    %v277 = vsub.f32 %v61, %v276
    %278 = vmatpush1.msra.mxu0 %v277
    %279 = vmatprep.subr.mxu0 0.0
    %280 = vmatpush1.msra.mxu0 0.0
    %281 = vmatprep.subr.mxu0 0.0
    %282 = vmatpush1.msra.mxu0 0.0
    %283 = vmatprep.subr.mxu0 0.0
    %284 = vmatpush1.msra.mxu0 0.0
    %285 = vmatprep.subr.mxu0 0.0
    %286 = vmatpush1.msra.mxu0 0.0
    %287 = vmatprep.subr.mxu0 0.0
    %288 = vmatpush1.msra.mxu0 0.0
    %289 = vmatprep.subr.mxu0 0.0
    %290 = vmatpush1.msra.mxu0 0.0
    %291 = vmatprep.subr.mxu0 0.0
    %292 = vmatpush1.msra.mxu0 0.0
    %293 = vmatprep.subr.mxu0 0.0
    %294 = vmatpush1.msra.mxu0 0.0
    %295 = vmatprep.subr.mxu0 0.0
    %296 = vmatpush1.msra.mxu0 0.0
    %297 = vmatprep.subr.mxu0 0.0
    %298 = vmatpush1.msra.mxu0 0.0
    %299 = vmatprep.subr.mxu0 0.0
    %300 = vmatpush1.msra.mxu0 0.0
    %301 = vmatprep.subr.mxu0 0.0
    %302 = vmatpush1.msra.mxu0 0.0
    %303 = vmatprep.subr.mxu0 0.0
    %304 = vmatpush1.msra.mxu0 0.0
    %305 = vmatprep.subr.mxu0 0.0
    %306 = vmatpush1.msra.mxu0 0.0
    %307 = vmatprep.subr.mxu0 0.0
    %308 = vmatpush1.msra.mxu0 0.0
    %309 = vmatprep.subr.mxu0 0.0
    %310 = vmatpush1.msra.mxu0 0.0
    %311 = vmatprep.subr.mxu0 0.0
    %312 = vmatpush1.msra.mxu0 0.0
    %313 = vmatprep.subr.mxu0 0.0
    %314 = vmatpush1.msra.mxu0 0.0
    %315 = vmatprep.subr.mxu0 0.0
    %316 = vmatpush1.msra.mxu0 0.0
    %317 = vmatprep.subr.mxu0 0.0
    %318 = vmatpush1.msra.mxu0 0.0
    %319 = vmatprep.subr.mxu0 0.0
    %320 = vmatpush1.msra.mxu0 0.0
    %321 = vmatprep.subr.mxu0 0.0
    %322 = vmatpush1.msra.mxu0 0.0
    %323 = vmatprep.subr.mxu0 0.0
    %324 = vmatpush1.msra.mxu0 0.0
    %325 = vmatprep.subr.mxu0 0.0
    %326 = vmatpush1.msra.mxu0 0.0
    %327 = vmatprep.subr.mxu0 0.0
    %328 = vmatpush1.msra.mxu0 0.0
    %329 = vmatprep.mubr.f32.mxu0 0.0
    %v330 = vand.u32 %v57, 4294901760
    %v331 = vsub.f32 %v57, %v330
    %332 = vmatmul.mubr.f32.gmra.mrb[0].mxu0 %v331
    %v333 = vpop.f32.mrb[0].mxu0
    %v334 = vadd.f32 %v248, %v333
    %v335 = vpop.f32.mrb[0].mxu0
    %336 = vdwg.mxu0
    %337 = vmatprep.subr.mxu0 0.0
    %v338 = vand.u32 %v41, 4294901760
    %339 = vmatpush1.msra.mxu0 %v338
    %340 = vmatprep.subr.mxu0 0.0
    %v341 = vand.u32 %v42, 4294901760
    %342 = vmatpush1.msra.mxu0 %v341
    %343 = vmatprep.subr.mxu0 0.0
    %v344 = vand.u32 %v43, 4294901760
    %345 = vmatpush1.msra.mxu0 %v344
    %346 = vmatprep.subr.mxu0 0.0
    %v347 = vand.u32 %v44, 4294901760
    %348 = vmatpush1.msra.mxu0 %v347
    %349 = vmatprep.subr.mxu0 0.0
    %v350 = vand.u32 %v45, 4294901760
    %351 = vmatpush1.msra.mxu0 %v350
    %352 = vmatprep.subr.mxu0 0.0
    %v353 = vand.u32 %v46, 4294901760
    %354 = vmatpush1.msra.mxu0 %v353
    %355 = vmatprep.subr.mxu0 0.0
    %v356 = vand.u32 %v61, 4294901760
    %357 = vmatpush1.msra.mxu0 %v356
    %358 = vmatprep.subr.mxu0 0.0
    %359 = vmatpush1.msra.mxu0 0.0
    %360 = vmatprep.subr.mxu0 0.0
    %361 = vmatpush1.msra.mxu0 0.0
    %362 = vmatprep.subr.mxu0 0.0
    %363 = vmatpush1.msra.mxu0 0.0
    %364 = vmatprep.subr.mxu0 0.0
    %365 = vmatpush1.msra.mxu0 0.0
    %366 = vmatprep.subr.mxu0 0.0
    %367 = vmatpush1.msra.mxu0 0.0
    %368 = vmatprep.subr.mxu0 0.0
    %369 = vmatpush1.msra.mxu0 0.0
    %370 = vmatprep.subr.mxu0 0.0
    %371 = vmatpush1.msra.mxu0 0.0
    %372 = vmatprep.subr.mxu0 0.0
    %373 = vmatpush1.msra.mxu0 0.0
    %374 = vmatprep.subr.mxu0 0.0
    %375 = vmatpush1.msra.mxu0 0.0
    %376 = vmatprep.subr.mxu0 0.0
    %377 = vmatpush1.msra.mxu0 0.0
    %378 = vmatprep.subr.mxu0 0.0
    %379 = vmatpush1.msra.mxu0 0.0
    %380 = vmatprep.subr.mxu0 0.0
    %381 = vmatpush1.msra.mxu0 0.0
    %382 = vmatprep.subr.mxu0 0.0
    %383 = vmatpush1.msra.mxu0 0.0
    %384 = vmatprep.subr.mxu0 0.0
    %385 = vmatpush1.msra.mxu0 0.0
    %386 = vmatprep.subr.mxu0 0.0
    %387 = vmatpush1.msra.mxu0 0.0
    %388 = vmatprep.subr.mxu0 0.0
    %389 = vmatpush1.msra.mxu0 0.0
    %390 = vmatprep.subr.mxu0 0.0
    %391 = vmatpush1.msra.mxu0 0.0
    %392 = vmatprep.subr.mxu0 0.0
    %393 = vmatpush1.msra.mxu0 0.0
    %394 = vmatprep.subr.mxu0 0.0
    %395 = vmatpush1.msra.mxu0 0.0
    %396 = vmatprep.subr.mxu0 0.0
    %397 = vmatpush1.msra.mxu0 0.0
    %398 = vmatprep.subr.mxu0 0.0
    %399 = vmatpush1.msra.mxu0 0.0
    %400 = vmatprep.subr.mxu0 0.0
    %401 = vmatpush1.msra.mxu0 0.0
    %402 = vmatprep.subr.mxu0 0.0
    %403 = vmatpush1.msra.mxu0 0.0
    %404 = vmatprep.subr.mxu0 0.0
    %405 = vmatpush1.msra.mxu0 0.0
    %406 = vmatprep.subr.mxu0 0.0
    %407 = vmatpush1.msra.mxu0 0.0
    %408 = vmatprep.mubr.f32.mxu0 0.0
    %v409 = vand.u32 %v57, 4294901760
    %v410 = vsub.f32 %v57, %v409
    %v411 = vand.u32 %v410, 4294901760
    %412 = vmatmul.mubr.f32.gmra.mrb[0].mxu0 %v411
    %v413 = vpop.f32.mrb[0].mxu0
    %v414 = vadd.f32 %v334, %v413
    %v415 = vpop.f32.mrb[0].mxu0
    %416 = vdwg.mxu0
    %417 = vmatprep.subr.mxu0 0.0
    %v418 = vand.u32 %v41, 4294901760
    %v419 = vsub.f32 %v41, %v418
    %v420 = vand.u32 %v419, 4294901760
    %421 = vmatpush1.msra.mxu0 %v420
    %422 = vmatprep.subr.mxu0 0.0
    %v423 = vand.u32 %v42, 4294901760
    %v424 = vsub.f32 %v42, %v423
    %v425 = vand.u32 %v424, 4294901760
    %426 = vmatpush1.msra.mxu0 %v425
    %427 = vmatprep.subr.mxu0 0.0
    %v428 = vand.u32 %v43, 4294901760
    %v429 = vsub.f32 %v43, %v428
    %v430 = vand.u32 %v429, 4294901760
    %431 = vmatpush1.msra.mxu0 %v430
    %432 = vmatprep.subr.mxu0 0.0
    %v433 = vand.u32 %v44, 4294901760
    %v434 = vsub.f32 %v44, %v433
    %v435 = vand.u32 %v434, 4294901760
    %436 = vmatpush1.msra.mxu0 %v435
    %437 = vmatprep.subr.mxu0 0.0
    %v438 = vand.u32 %v45, 4294901760
    %v439 = vsub.f32 %v45, %v438
    %v440 = vand.u32 %v439, 4294901760
    %441 = vmatpush1.msra.mxu0 %v440
    %442 = vmatprep.subr.mxu0 0.0
    %v443 = vand.u32 %v46, 4294901760
    %v444 = vsub.f32 %v46, %v443
    %v445 = vand.u32 %v444, 4294901760
    %446 = vmatpush1.msra.mxu0 %v445
    %447 = vmatprep.subr.mxu0 0.0
    %v448 = vand.u32 %v61, 4294901760
    %v449 = vsub.f32 %v61, %v448
    %v450 = vand.u32 %v449, 4294901760
    %451 = vmatpush1.msra.mxu0 %v450
    %452 = vmatprep.subr.mxu0 0.0
    %453 = vmatpush1.msra.mxu0 0.0
    %454 = vmatprep.subr.mxu0 0.0
    %455 = vmatpush1.msra.mxu0 0.0
    %456 = vmatprep.subr.mxu0 0.0
    %457 = vmatpush1.msra.mxu0 0.0
    %458 = vmatprep.subr.mxu0 0.0
    %459 = vmatpush1.msra.mxu0 0.0
    %460 = vmatprep.subr.mxu0 0.0
    %461 = vmatpush1.msra.mxu0 0.0
    %462 = vmatprep.subr.mxu0 0.0
    %463 = vmatpush1.msra.mxu0 0.0
    %464 = vmatprep.subr.mxu0 0.0
    %465 = vmatpush1.msra.mxu0 0.0
    %466 = vmatprep.subr.mxu0 0.0
    %467 = vmatpush1.msra.mxu0 0.0
    %468 = vmatprep.subr.mxu0 0.0
    %469 = vmatpush1.msra.mxu0 0.0
    %470 = vmatprep.subr.mxu0 0.0
    %471 = vmatpush1.msra.mxu0 0.0
    %472 = vmatprep.subr.mxu0 0.0
    %473 = vmatpush1.msra.mxu0 0.0
    %474 = vmatprep.subr.mxu0 0.0
    %475 = vmatpush1.msra.mxu0 0.0
    %476 = vmatprep.subr.mxu0 0.0
    %477 = vmatpush1.msra.mxu0 0.0
    %478 = vmatprep.subr.mxu0 0.0
    %479 = vmatpush1.msra.mxu0 0.0
    %480 = vmatprep.subr.mxu0 0.0
    %481 = vmatpush1.msra.mxu0 0.0
    %482 = vmatprep.subr.mxu0 0.0
    %483 = vmatpush1.msra.mxu0 0.0
    %484 = vmatprep.subr.mxu0 0.0
    %485 = vmatpush1.msra.mxu0 0.0
    %486 = vmatprep.subr.mxu0 0.0
    %487 = vmatpush1.msra.mxu0 0.0
    %488 = vmatprep.subr.mxu0 0.0
    %489 = vmatpush1.msra.mxu0 0.0
    %490 = vmatprep.subr.mxu0 0.0
    %491 = vmatpush1.msra.mxu0 0.0
    %492 = vmatprep.subr.mxu0 0.0
    %493 = vmatpush1.msra.mxu0 0.0
    %494 = vmatprep.subr.mxu0 0.0
    %495 = vmatpush1.msra.mxu0 0.0
    %496 = vmatprep.subr.mxu0 0.0
    %497 = vmatpush1.msra.mxu0 0.0
    %498 = vmatprep.subr.mxu0 0.0
    %499 = vmatpush1.msra.mxu0 0.0
    %500 = vmatprep.subr.mxu0 0.0
    %501 = vmatpush1.msra.mxu0 0.0
    %502 = vmatprep.mubr.f32.mxu0 0.0
    %v503 = vand.u32 %v57, 4294901760
    %504 = vmatmul.mubr.f32.gmra.mrb[0].mxu0 %v503
    %v505 = vpop.f32.mrb[0].mxu0
    %v506 = vadd.f32 %v414, %v505
    %v507 = vpop.f32.mrb[0].mxu0
    %508 = vdwg.mxu0
    %509 = vmatprep.subr.mxu0 0.0
    %v510 = vand.u32 %v41, 4294901760
    %511 = vmatpush1.msra.mxu0 %v510
    %512 = vmatprep.subr.mxu0 0.0
    %v513 = vand.u32 %v42, 4294901760
    %514 = vmatpush1.msra.mxu0 %v513
    %515 = vmatprep.subr.mxu0 0.0
    %v516 = vand.u32 %v43, 4294901760
    %517 = vmatpush1.msra.mxu0 %v516
    %518 = vmatprep.subr.mxu0 0.0
    %v519 = vand.u32 %v44, 4294901760
    %520 = vmatpush1.msra.mxu0 %v519
    %521 = vmatprep.subr.mxu0 0.0
    %v522 = vand.u32 %v45, 4294901760
    %523 = vmatpush1.msra.mxu0 %v522
    %524 = vmatprep.subr.mxu0 0.0
    %v525 = vand.u32 %v46, 4294901760
    %526 = vmatpush1.msra.mxu0 %v525
    %527 = vmatprep.subr.mxu0 0.0
    %v528 = vand.u32 %v61, 4294901760
    %529 = vmatpush1.msra.mxu0 %v528
    %530 = vmatprep.subr.mxu0 0.0
    %531 = vmatpush1.msra.mxu0 0.0
    %532 = vmatprep.subr.mxu0 0.0
    %533 = vmatpush1.msra.mxu0 0.0
    %534 = vmatprep.subr.mxu0 0.0
    %535 = vmatpush1.msra.mxu0 0.0
    %536 = vmatprep.subr.mxu0 0.0
    %537 = vmatpush1.msra.mxu0 0.0
    %538 = vmatprep.subr.mxu0 0.0
    %539 = vmatpush1.msra.mxu0 0.0
    %540 = vmatprep.subr.mxu0 0.0
    %541 = vmatpush1.msra.mxu0 0.0
    %542 = vmatprep.subr.mxu0 0.0
    %543 = vmatpush1.msra.mxu0 0.0
    %544 = vmatprep.subr.mxu0 0.0
    %545 = vmatpush1.msra.mxu0 0.0
    %546 = vmatprep.subr.mxu0 0.0
    %547 = vmatpush1.msra.mxu0 0.0
    %548 = vmatprep.subr.mxu0 0.0
    %549 = vmatpush1.msra.mxu0 0.0
    %550 = vmatprep.subr.mxu0 0.0
    %551 = vmatpush1.msra.mxu0 0.0
    %552 = vmatprep.subr.mxu0 0.0
    %553 = vmatpush1.msra.mxu0 0.0
    %554 = vmatprep.subr.mxu0 0.0
    %555 = vmatpush1.msra.mxu0 0.0
    %556 = vmatprep.subr.mxu0 0.0
    %557 = vmatpush1.msra.mxu0 0.0
    %558 = vmatprep.subr.mxu0 0.0
    %559 = vmatpush1.msra.mxu0 0.0
    %560 = vmatprep.subr.mxu0 0.0
    %561 = vmatpush1.msra.mxu0 0.0
    %562 = vmatprep.subr.mxu0 0.0
    %563 = vmatpush1.msra.mxu0 0.0
    %564 = vmatprep.subr.mxu0 0.0
    %565 = vmatpush1.msra.mxu0 0.0
    %566 = vmatprep.subr.mxu0 0.0
    %567 = vmatpush1.msra.mxu0 0.0
    %568 = vmatprep.subr.mxu0 0.0
    %569 = vmatpush1.msra.mxu0 0.0
    %570 = vmatprep.subr.mxu0 0.0
    %571 = vmatpush1.msra.mxu0 0.0
    %572 = vmatprep.subr.mxu0 0.0
    %573 = vmatpush1.msra.mxu0 0.0
    %574 = vmatprep.subr.mxu0 0.0
    %575 = vmatpush1.msra.mxu0 0.0
    %576 = vmatprep.subr.mxu0 0.0
    %577 = vmatpush1.msra.mxu0 0.0
    %578 = vmatprep.subr.mxu0 0.0
    %579 = vmatpush1.msra.mxu0 0.0
    %580 = vmatprep.mubr.f32.mxu0 0.0
    %v581 = vand.u32 %v57, 4294901760
    %582 = vmatmul.mubr.f32.gmra.mrb[0].mxu0 %v581
    %v583 = vpop.f32.mrb[0].mxu0
    %v584 = vadd.f32 %v506, %v583
    %v585 = vpop.f32.mrb[0].mxu0
    %586 = vdwg.mxu0
    %v587 = vmax.f32 %v584, 0.0
    %v588 = vld [vmem:[%s3] sm:$0xff]
    %v589 = vld [vmem:[%s3 + $0x8] sm:$0xff]
    %v590 = vld [vmem:[%s3 + $0x10] sm:$0xff]
    %v591 = vld [vmem:[%s3 + $0x18] sm:$0xff]
    %v592 = vld [vmem:[%s3 + $0x20] sm:$0xff]
    %v593 = vld [vmem:[%s3 + $0x28] sm:$0xff]
    %v594 = vld [vmem:[%s3 + $0x30] sm:$0xff]
    %v595 = vld [vmem:[%s3 + $0x38] sm:$0xff]
    %v596 = vld [vmem:[%s3 + $0x40] sm:$0xff]
    %v597 = vld [vmem:[%s3 + $0x48] sm:$0xff]
    %v598 = vld [vmem:[%s3 + $0x50] sm:$0xff]
    %v599 = vld [vmem:[%s3 + $0x58] sm:$0xff]
    %v600 = vld [vmem:[%s3 + $0x60] sm:$0xff]
    %v601 = vld [vmem:[%s3 + $0x68] sm:$0xff]
    %v602 = vld [vmem:[%s3 + $0x70] sm:$0xff]
    %v603 = vld [vmem:[%s3 + $0x78] sm:$0xff]
    %v604 = vld [vmem:[%s4] sm:$0x1]
    %v606 = vlaneseq
    %v607 = vshrl.u32 %v606, 7
    %v608 = vsub.s32 0, %v607
    %v609 = vrot.slane %v604, %v608
    %611 = vmatprep.subr.mxu0 0.0
    %v612 = vand.u32 %v588, 4294901760
    %613 = vmatpush1.msra.mxu0 %v612
    %614 = vmatprep.subr.mxu0 0.0
    %v615 = vand.u32 %v589, 4294901760
    %616 = vmatpush1.msra.mxu0 %v615
    %617 = vmatprep.subr.mxu0 0.0
    %v618 = vand.u32 %v590, 4294901760
    %619 = vmatpush1.msra.mxu0 %v618
    %620 = vmatprep.subr.mxu0 0.0
    %v621 = vand.u32 %v591, 4294901760
    %622 = vmatpush1.msra.mxu0 %v621
    %623 = vmatprep.subr.mxu0 0.0
    %v624 = vand.u32 %v592, 4294901760
    %625 = vmatpush1.msra.mxu0 %v624
    %626 = vmatprep.subr.mxu0 0.0
    %v627 = vand.u32 %v593, 4294901760
    %628 = vmatpush1.msra.mxu0 %v627
    %629 = vmatprep.subr.mxu0 0.0
    %v630 = vand.u32 %v594, 4294901760
    %631 = vmatpush1.msra.mxu0 %v630
    %632 = vmatprep.subr.mxu0 0.0
    %v633 = vand.u32 %v595, 4294901760
    %634 = vmatpush1.msra.mxu0 %v633
    %635 = vmatprep.subr.mxu0 0.0
    %v636 = vand.u32 %v596, 4294901760
    %637 = vmatpush1.msra.mxu0 %v636
    %638 = vmatprep.subr.mxu0 0.0
    %v639 = vand.u32 %v597, 4294901760
    %640 = vmatpush1.msra.mxu0 %v639
    %641 = vmatprep.subr.mxu0 0.0
    %v642 = vand.u32 %v598, 4294901760
    %643 = vmatpush1.msra.mxu0 %v642
    %644 = vmatprep.subr.mxu0 0.0
    %v645 = vand.u32 %v599, 4294901760
    %646 = vmatpush1.msra.mxu0 %v645
    %647 = vmatprep.subr.mxu0 0.0
    %v648 = vand.u32 %v600, 4294901760
    %649 = vmatpush1.msra.mxu0 %v648
    %650 = vmatprep.subr.mxu0 0.0
    %v651 = vand.u32 %v601, 4294901760
    %652 = vmatpush1.msra.mxu0 %v651
    %653 = vmatprep.subr.mxu0 0.0
    %v654 = vand.u32 %v602, 4294901760
    %655 = vmatpush1.msra.mxu0 %v654
    %656 = vmatprep.subr.mxu0 0.0
    %v657 = vand.u32 %v603, 4294901760
    %658 = vmatpush1.msra.mxu0 %v657
    %659 = vmatprep.subr.mxu0 0.0
    %660 = vmatpush1.msra.mxu0 0.0
    %661 = vmatprep.subr.mxu0 0.0
    %662 = vmatpush1.msra.mxu0 0.0
    %663 = vmatprep.subr.mxu0 0.0
    %664 = vmatpush1.msra.mxu0 0.0
    %665 = vmatprep.subr.mxu0 0.0
    %666 = vmatpush1.msra.mxu0 0.0
    %667 = vmatprep.subr.mxu0 0.0
    %668 = vmatpush1.msra.mxu0 0.0
    %669 = vmatprep.subr.mxu0 0.0
    %670 = vmatpush1.msra.mxu0 0.0
    %671 = vmatprep.subr.mxu0 0.0
    %672 = vmatpush1.msra.mxu0 0.0
    %673 = vmatprep.subr.mxu0 0.0
    %674 = vmatpush1.msra.mxu0 0.0
    %675 = vmatprep.subr.mxu0 0.0
    %676 = vmatpush1.msra.mxu0 0.0
    %677 = vmatprep.subr.mxu0 0.0
    %678 = vmatpush1.msra.mxu0 0.0
    %679 = vmatprep.subr.mxu0 0.0
    %680 = vmatpush1.msra.mxu0 0.0
    %681 = vmatprep.subr.mxu0 0.0
    %682 = vmatpush1.msra.mxu0 0.0
    %683 = vmatprep.subr.mxu0 0.0
    %684 = vmatpush1.msra.mxu0 0.0
    %685 = vmatprep.subr.mxu0 0.0
    %686 = vmatpush1.msra.mxu0 0.0
    %687 = vmatprep.subr.mxu0 0.0
    %688 = vmatpush1.msra.mxu0 0.0
    %689 = vmatprep.subr.mxu0 0.0
    %690 = vmatpush1.msra.mxu0 0.0
    %691 = vmatprep.mubr.f32.mxu0 0.0
    %v692 = vand.u32 %v587, 4294901760
    %v693 = vsub.f32 %v587, %v692
    %v694 = vand.u32 %v693, 4294901760
    %v695 = vsub.f32 %v693, %v694
    %v696 = vand.u32 %v695, 4294901760
    %697 = vmatmul.mubr.f32.gmra.mrb[0].mxu0 %v696
    %v698 = vpop.f32.mrb[0].mxu0
    %v699 = vadd.f32 %v609, %v698
    %v700 = vpop.f32.mrb[0].mxu0
    %701 = vdwg.mxu0
    %702 = vmatprep.subr.mxu0 0.0
    %v703 = vand.u32 %v588, 4294901760
    %v704 = vsub.f32 %v588, %v703
    %v705 = vand.u32 %v704, 4294901760
    %v706 = vsub.f32 %v704, %v705
    %v707 = vand.u32 %v706, 4294901760
    %708 = vmatpush1.msra.mxu0 %v707
    %709 = vmatprep.subr.mxu0 0.0
    %v710 = vand.u32 %v589, 4294901760
    %v711 = vsub.f32 %v589, %v710
    %v712 = vand.u32 %v711, 4294901760
    %v713 = vsub.f32 %v711, %v712
    %v714 = vand.u32 %v713, 4294901760
    %715 = vmatpush1.msra.mxu0 %v714
    %716 = vmatprep.subr.mxu0 0.0
    %v717 = vand.u32 %v590, 4294901760
    %v718 = vsub.f32 %v590, %v717
    %v719 = vand.u32 %v718, 4294901760
    %v720 = vsub.f32 %v718, %v719
    %v721 = vand.u32 %v720, 4294901760
    %722 = vmatpush1.msra.mxu0 %v721
    %723 = vmatprep.subr.mxu0 0.0
    %v724 = vand.u32 %v591, 4294901760
    %v725 = vsub.f32 %v591, %v724
    %v726 = vand.u32 %v725, 4294901760
    %v727 = vsub.f32 %v725, %v726
    %v728 = vand.u32 %v727, 4294901760
    %729 = vmatpush1.msra.mxu0 %v728
    %730 = vmatprep.subr.mxu0 0.0
    %v731 = vand.u32 %v592, 4294901760
    %v732 = vsub.f32 %v592, %v731
    %v733 = vand.u32 %v732, 4294901760
    %v734 = vsub.f32 %v732, %v733
    %v735 = vand.u32 %v734, 4294901760
    %736 = vmatpush1.msra.mxu0 %v735
    %737 = vmatprep.subr.mxu0 0.0
    %v738 = vand.u32 %v593, 4294901760
    %v739 = vsub.f32 %v593, %v738
    %v740 = vand.u32 %v739, 4294901760
    %v741 = vsub.f32 %v739, %v740
    %v742 = vand.u32 %v741, 4294901760
    %743 = vmatpush1.msra.mxu0 %v742
    %744 = vmatprep.subr.mxu0 0.0
    %v745 = vand.u32 %v594, 4294901760
    %v746 = vsub.f32 %v594, %v745
    %v747 = vand.u32 %v746, 4294901760
    %v748 = vsub.f32 %v746, %v747
    %v749 = vand.u32 %v748, 4294901760
    %750 = vmatpush1.msra.mxu0 %v749
    %751 = vmatprep.subr.mxu0 0.0
    %v752 = vand.u32 %v595, 4294901760
    %v753 = vsub.f32 %v595, %v752
    %v754 = vand.u32 %v753, 4294901760
    %v755 = vsub.f32 %v753, %v754
    %v756 = vand.u32 %v755, 4294901760
    %757 = vmatpush1.msra.mxu0 %v756
    %758 = vmatprep.subr.mxu0 0.0
    %v759 = vand.u32 %v596, 4294901760
    %v760 = vsub.f32 %v596, %v759
    %v761 = vand.u32 %v760, 4294901760
    %v762 = vsub.f32 %v760, %v761
    %v763 = vand.u32 %v762, 4294901760
    %764 = vmatpush1.msra.mxu0 %v763
    %765 = vmatprep.subr.mxu0 0.0
    %v766 = vand.u32 %v597, 4294901760
    %v767 = vsub.f32 %v597, %v766
    %v768 = vand.u32 %v767, 4294901760
    %v769 = vsub.f32 %v767, %v768
    %v770 = vand.u32 %v769, 4294901760
    %771 = vmatpush1.msra.mxu0 %v770
    %772 = vmatprep.subr.mxu0 0.0
    %v773 = vand.u32 %v598, 4294901760
    %v774 = vsub.f32 %v598, %v773
    %v775 = vand.u32 %v774, 4294901760
    %v776 = vsub.f32 %v774, %v775
    %v777 = vand.u32 %v776, 4294901760
    %778 = vmatpush1.msra.mxu0 %v777
    %779 = vmatprep.subr.mxu0 0.0
    %v780 = vand.u32 %v599, 4294901760
    %v781 = vsub.f32 %v599, %v780
    %v782 = vand.u32 %v781, 4294901760
    %v783 = vsub.f32 %v781, %v782
    %v784 = vand.u32 %v783, 4294901760
    %785 = vmatpush1.msra.mxu0 %v784
    %786 = vmatprep.subr.mxu0 0.0
    %v787 = vand.u32 %v600, 4294901760
    %v788 = vsub.f32 %v600, %v787
    %v789 = vand.u32 %v788, 4294901760
    %v790 = vsub.f32 %v788, %v789
    %v791 = vand.u32 %v790, 4294901760
    %792 = vmatpush1.msra.mxu0 %v791
    %793 = vmatprep.subr.mxu0 0.0
    %v794 = vand.u32 %v601, 4294901760
    %v795 = vsub.f32 %v601, %v794
    %v796 = vand.u32 %v795, 4294901760
    %v797 = vsub.f32 %v795, %v796
    %v798 = vand.u32 %v797, 4294901760
    %799 = vmatpush1.msra.mxu0 %v798
    %800 = vmatprep.subr.mxu0 0.0
    %v801 = vand.u32 %v602, 4294901760
    %v802 = vsub.f32 %v602, %v801
    %v803 = vand.u32 %v802, 4294901760
    %v804 = vsub.f32 %v802, %v803
    %v805 = vand.u32 %v804, 4294901760
    %806 = vmatpush1.msra.mxu0 %v805
    %807 = vmatprep.subr.mxu0 0.0
    %v808 = vand.u32 %v603, 4294901760
    %v809 = vsub.f32 %v603, %v808
    %v810 = vand.u32 %v809, 4294901760
    %v811 = vsub.f32 %v809, %v810
    %v812 = vand.u32 %v811, 4294901760
    %813 = vmatpush1.msra.mxu0 %v812
    %814 = vmatprep.subr.mxu0 0.0
    %815 = vmatpush1.msra.mxu0 0.0
    %816 = vmatprep.subr.mxu0 0.0
    %817 = vmatpush1.msra.mxu0 0.0
    %818 = vmatprep.subr.mxu0 0.0
    %819 = vmatpush1.msra.mxu0 0.0
    %820 = vmatprep.subr.mxu0 0.0
    %821 = vmatpush1.msra.mxu0 0.0
    %822 = vmatprep.subr.mxu0 0.0
    %823 = vmatpush1.msra.mxu0 0.0
    %824 = vmatprep.subr.mxu0 0.0
    %825 = vmatpush1.msra.mxu0 0.0
    %826 = vmatprep.subr.mxu0 0.0
    %827 = vmatpush1.msra.mxu0 0.0
    %828 = vmatprep.subr.mxu0 0.0
    %829 = vmatpush1.msra.mxu0 0.0
    %830 = vmatprep.subr.mxu0 0.0
    %831 = vmatpush1.msra.mxu0 0.0
    %832 = vmatprep.subr.mxu0 0.0
    %833 = vmatpush1.msra.mxu0 0.0
    %834 = vmatprep.subr.mxu0 0.0
    %835 = vmatpush1.msra.mxu0 0.0
    %836 = vmatprep.subr.mxu0 0.0
    %837 = vmatpush1.msra.mxu0 0.0
    %838 = vmatprep.subr.mxu0 0.0
    %839 = vmatpush1.msra.mxu0 0.0
    %840 = vmatprep.subr.mxu0 0.0
    %841 = vmatpush1.msra.mxu0 0.0
    %842 = vmatprep.subr.mxu0 0.0
    %843 = vmatpush1.msra.mxu0 0.0
    %844 = vmatprep.subr.mxu0 0.0
    %845 = vmatpush1.msra.mxu0 0.0
    %846 = vmatprep.mubr.f32.mxu0 0.0
    %v847 = vand.u32 %v587, 4294901760
    %848 = vmatmul.mubr.f32.gmra.mrb[0].mxu0 %v847
    %v849 = vpop.f32.mrb[0].mxu0
    %v850 = vadd.f32 %v699, %v849
    %v851 = vpop.f32.mrb[0].mxu0
    %852 = vdwg.mxu0
    %853 = vmatprep.subr.mxu0 0.0
    %v854 = vand.u32 %v588, 4294901760
    %v855 = vsub.f32 %v588, %v854
    %856 = vmatpush1.msra.mxu0 %v855
    %857 = vmatprep.subr.mxu0 0.0
    %v858 = vand.u32 %v589, 4294901760
    %v859 = vsub.f32 %v589, %v858
    %860 = vmatpush1.msra.mxu0 %v859
    %861 = vmatprep.subr.mxu0 0.0
    %v862 = vand.u32 %v590, 4294901760
    %v863 = vsub.f32 %v590, %v862
    %864 = vmatpush1.msra.mxu0 %v863
    %865 = vmatprep.subr.mxu0 0.0
    %v866 = vand.u32 %v591, 4294901760
    %v867 = vsub.f32 %v591, %v866
    %868 = vmatpush1.msra.mxu0 %v867
    %869 = vmatprep.subr.mxu0 0.0
    %v870 = vand.u32 %v592, 4294901760
    %v871 = vsub.f32 %v592, %v870
    %872 = vmatpush1.msra.mxu0 %v871
    %873 = vmatprep.subr.mxu0 0.0
    %v874 = vand.u32 %v593, 4294901760
    %v875 = vsub.f32 %v593, %v874
    %876 = vmatpush1.msra.mxu0 %v875
    %877 = vmatprep.subr.mxu0 0.0
    %v878 = vand.u32 %v594, 4294901760
    %v879 = vsub.f32 %v594, %v878
    %880 = vmatpush1.msra.mxu0 %v879
    %881 = vmatprep.subr.mxu0 0.0
    %v882 = vand.u32 %v595, 4294901760
    %v883 = vsub.f32 %v595, %v882
    %884 = vmatpush1.msra.mxu0 %v883
    %885 = vmatprep.subr.mxu0 0.0
    %v886 = vand.u32 %v596, 4294901760
    %v887 = vsub.f32 %v596, %v886
    %888 = vmatpush1.msra.mxu0 %v887
    %889 = vmatprep.subr.mxu0 0.0
    %v890 = vand.u32 %v597, 4294901760
    %v891 = vsub.f32 %v597, %v890
    %892 = vmatpush1.msra.mxu0 %v891
    %893 = vmatprep.subr.mxu0 0.0
    %v894 = vand.u32 %v598, 4294901760
    %v895 = vsub.f32 %v598, %v894
    %896 = vmatpush1.msra.mxu0 %v895
    %897 = vmatprep.subr.mxu0 0.0
    %v898 = vand.u32 %v599, 4294901760
    %v899 = vsub.f32 %v599, %v898
    %900 = vmatpush1.msra.mxu0 %v899
    %901 = vmatprep.subr.mxu0 0.0
    %v902 = vand.u32 %v600, 4294901760
    %v903 = vsub.f32 %v600, %v902
    %904 = vmatpush1.msra.mxu0 %v903
    %905 = vmatprep.subr.mxu0 0.0
    %v906 = vand.u32 %v601, 4294901760
    %v907 = vsub.f32 %v601, %v906
    %908 = vmatpush1.msra.mxu0 %v907
    %909 = vmatprep.subr.mxu0 0.0
    %v910 = vand.u32 %v602, 4294901760
    %v911 = vsub.f32 %v602, %v910
    %912 = vmatpush1.msra.mxu0 %v911
    %913 = vmatprep.subr.mxu0 0.0
    %v914 = vand.u32 %v603, 4294901760
    %v915 = vsub.f32 %v603, %v914
    %916 = vmatpush1.msra.mxu0 %v915
    %917 = vmatprep.subr.mxu0 0.0
    %918 = vmatpush1.msra.mxu0 0.0
    %919 = vmatprep.subr.mxu0 0.0
    %920 = vmatpush1.msra.mxu0 0.0
    %921 = vmatprep.subr.mxu0 0.0
    %922 = vmatpush1.msra.mxu0 0.0
    %923 = vmatprep.subr.mxu0 0.0
    %924 = vmatpush1.msra.mxu0 0.0
    %925 = vmatprep.subr.mxu0 0.0
    %926 = vmatpush1.msra.mxu0 0.0
    %927 = vmatprep.subr.mxu0 0.0
    %928 = vmatpush1.msra.mxu0 0.0
    %929 = vmatprep.subr.mxu0 0.0
    %930 = vmatpush1.msra.mxu0 0.0
    %931 = vmatprep.subr.mxu0 0.0
    %932 = vmatpush1.msra.mxu0 0.0
    %933 = vmatprep.subr.mxu0 0.0
    %934 = vmatpush1.msra.mxu0 0.0
    %935 = vmatprep.subr.mxu0 0.0
    %936 = vmatpush1.msra.mxu0 0.0
    %937 = vmatprep.subr.mxu0 0.0
    %938 = vmatpush1.msra.mxu0 0.0
    %939 = vmatprep.subr.mxu0 0.0
    %940 = vmatpush1.msra.mxu0 0.0
    %941 = vmatprep.subr.mxu0 0.0
    %942 = vmatpush1.msra.mxu0 0.0
    %943 = vmatprep.subr.mxu0 0.0
    %944 = vmatpush1.msra.mxu0 0.0
    %945 = vmatprep.subr.mxu0 0.0
    %946 = vmatpush1.msra.mxu0 0.0
    %947 = vmatprep.subr.mxu0 0.0
    %948 = vmatpush1.msra.mxu0 0.0
    %949 = vmatprep.mubr.f32.mxu0 0.0
    %v950 = vand.u32 %v587, 4294901760
    %v951 = vsub.f32 %v587, %v950
    %952 = vmatmul.mubr.f32.gmra.mrb[0].mxu0 %v951
    %v953 = vpop.f32.mrb[0].mxu0
    %v954 = vadd.f32 %v850, %v953
    %v955 = vpop.f32.mrb[0].mxu0
    %956 = vdwg.mxu0
    %957 = vmatprep.subr.mxu0 0.0
    %v958 = vand.u32 %v588, 4294901760
    %959 = vmatpush1.msra.mxu0 %v958
    %960 = vmatprep.subr.mxu0 0.0
    %v961 = vand.u32 %v589, 4294901760
    %962 = vmatpush1.msra.mxu0 %v961
    %963 = vmatprep.subr.mxu0 0.0
    %v964 = vand.u32 %v590, 4294901760
    %965 = vmatpush1.msra.mxu0 %v964
    %966 = vmatprep.subr.mxu0 0.0
    %v967 = vand.u32 %v591, 4294901760
    %968 = vmatpush1.msra.mxu0 %v967
    %969 = vmatprep.subr.mxu0 0.0
    %v970 = vand.u32 %v592, 4294901760
    %971 = vmatpush1.msra.mxu0 %v970
    %972 = vmatprep.subr.mxu0 0.0
    %v973 = vand.u32 %v593, 4294901760
    %974 = vmatpush1.msra.mxu0 %v973
    %975 = vmatprep.subr.mxu0 0.0
    %v976 = vand.u32 %v594, 4294901760
    %977 = vmatpush1.msra.mxu0 %v976
    %978 = vmatprep.subr.mxu0 0.0
    %v979 = vand.u32 %v595, 4294901760
    %980 = vmatpush1.msra.mxu0 %v979
    %981 = vmatprep.subr.mxu0 0.0
    %v982 = vand.u32 %v596, 4294901760
    %983 = vmatpush1.msra.mxu0 %v982
    %984 = vmatprep.subr.mxu0 0.0
    %v985 = vand.u32 %v597, 4294901760
    %986 = vmatpush1.msra.mxu0 %v985
    %987 = vmatprep.subr.mxu0 0.0
    %v988 = vand.u32 %v598, 4294901760
    %989 = vmatpush1.msra.mxu0 %v988
    %990 = vmatprep.subr.mxu0 0.0
    %v991 = vand.u32 %v599, 4294901760
    %992 = vmatpush1.msra.mxu0 %v991
    %993 = vmatprep.subr.mxu0 0.0
    %v994 = vand.u32 %v600, 4294901760
    %995 = vmatpush1.msra.mxu0 %v994
    %996 = vmatprep.subr.mxu0 0.0
    %v997 = vand.u32 %v601, 4294901760
    %998 = vmatpush1.msra.mxu0 %v997
    %999 = vmatprep.subr.mxu0 0.0
    %v1000 = vand.u32 %v602, 4294901760
    %1001 = vmatpush1.msra.mxu0 %v1000
    %1002 = vmatprep.subr.mxu0 0.0
    %v1003 = vand.u32 %v603, 4294901760
    %1004 = vmatpush1.msra.mxu0 %v1003
    %1005 = vmatprep.subr.mxu0 0.0
    %1006 = vmatpush1.msra.mxu0 0.0
    %1007 = vmatprep.subr.mxu0 0.0
    %1008 = vmatpush1.msra.mxu0 0.0
    %1009 = vmatprep.subr.mxu0 0.0
    %1010 = vmatpush1.msra.mxu0 0.0
    %1011 = vmatprep.subr.mxu0 0.0
    %1012 = vmatpush1.msra.mxu0 0.0
    %1013 = vmatprep.subr.mxu0 0.0
    %1014 = vmatpush1.msra.mxu0 0.0
    %1015 = vmatprep.subr.mxu0 0.0
    %1016 = vmatpush1.msra.mxu0 0.0
    %1017 = vmatprep.subr.mxu0 0.0
    %1018 = vmatpush1.msra.mxu0 0.0
    %1019 = vmatprep.subr.mxu0 0.0
    %1020 = vmatpush1.msra.mxu0 0.0
    %1021 = vmatprep.subr.mxu0 0.0
    %1022 = vmatpush1.msra.mxu0 0.0
    %1023 = vmatprep.subr.mxu0 0.0
    %1024 = vmatpush1.msra.mxu0 0.0
    %1025 = vmatprep.subr.mxu0 0.0
    %1026 = vmatpush1.msra.mxu0 0.0
    %1027 = vmatprep.subr.mxu0 0.0
    %1028 = vmatpush1.msra.mxu0 0.0
    %1029 = vmatprep.subr.mxu0 0.0
    %1030 = vmatpush1.msra.mxu0 0.0
    %1031 = vmatprep.subr.mxu0 0.0
    %1032 = vmatpush1.msra.mxu0 0.0
    %1033 = vmatprep.subr.mxu0 0.0
    %1034 = vmatpush1.msra.mxu0 0.0
    %1035 = vmatprep.subr.mxu0 0.0
    %1036 = vmatpush1.msra.mxu0 0.0
    %1037 = vmatprep.mubr.f32.mxu0 0.0
    %v1038 = vand.u32 %v587, 4294901760
    %v1039 = vsub.f32 %v587, %v1038
    %v1040 = vand.u32 %v1039, 4294901760
    %1041 = vmatmul.mubr.f32.gmra.mrb[0].mxu0 %v1040
    %v1042 = vpop.f32.mrb[0].mxu0
    %v1043 = vadd.f32 %v954, %v1042
    %v1044 = vpop.f32.mrb[0].mxu0
    %1045 = vdwg.mxu0
    %1046 = vmatprep.subr.mxu0 0.0
    %v1047 = vand.u32 %v588, 4294901760
    %v1048 = vsub.f32 %v588, %v1047
    %v1049 = vand.u32 %v1048, 4294901760
    %1050 = vmatpush1.msra.mxu0 %v1049
    %1051 = vmatprep.subr.mxu0 0.0
    %v1052 = vand.u32 %v589, 4294901760
    %v1053 = vsub.f32 %v589, %v1052
    %v1054 = vand.u32 %v1053, 4294901760
    %1055 = vmatpush1.msra.mxu0 %v1054
    %1056 = vmatprep.subr.mxu0 0.0
    %v1057 = vand.u32 %v590, 4294901760
    %v1058 = vsub.f32 %v590, %v1057
    %v1059 = vand.u32 %v1058, 4294901760
    %1060 = vmatpush1.msra.mxu0 %v1059
    %1061 = vmatprep.subr.mxu0 0.0
    %v1062 = vand.u32 %v591, 4294901760
    %v1063 = vsub.f32 %v591, %v1062
    %v1064 = vand.u32 %v1063, 4294901760
    %1065 = vmatpush1.msra.mxu0 %v1064
    %1066 = vmatprep.subr.mxu0 0.0
    %v1067 = vand.u32 %v592, 4294901760
    %v1068 = vsub.f32 %v592, %v1067
    %v1069 = vand.u32 %v1068, 4294901760
    %1070 = vmatpush1.msra.mxu0 %v1069
    %1071 = vmatprep.subr.mxu0 0.0
    %v1072 = vand.u32 %v593, 4294901760
    %v1073 = vsub.f32 %v593, %v1072
    %v1074 = vand.u32 %v1073, 4294901760
    %1075 = vmatpush1.msra.mxu0 %v1074
    %1076 = vmatprep.subr.mxu0 0.0
    %v1077 = vand.u32 %v594, 4294901760
    %v1078 = vsub.f32 %v594, %v1077
    %v1079 = vand.u32 %v1078, 4294901760
    %1080 = vmatpush1.msra.mxu0 %v1079
    %1081 = vmatprep.subr.mxu0 0.0
    %v1082 = vand.u32 %v595, 4294901760
    %v1083 = vsub.f32 %v595, %v1082
    %v1084 = vand.u32 %v1083, 4294901760
    %1085 = vmatpush1.msra.mxu0 %v1084
    %1086 = vmatprep.subr.mxu0 0.0
    %v1087 = vand.u32 %v596, 4294901760
    %v1088 = vsub.f32 %v596, %v1087
    %v1089 = vand.u32 %v1088, 4294901760
    %1090 = vmatpush1.msra.mxu0 %v1089
    %1091 = vmatprep.subr.mxu0 0.0
    %v1092 = vand.u32 %v597, 4294901760
    %v1093 = vsub.f32 %v597, %v1092
    %v1094 = vand.u32 %v1093, 4294901760
    %1095 = vmatpush1.msra.mxu0 %v1094
    %1096 = vmatprep.subr.mxu0 0.0
    %v1097 = vand.u32 %v598, 4294901760
    %v1098 = vsub.f32 %v598, %v1097
    %v1099 = vand.u32 %v1098, 4294901760
    %1100 = vmatpush1.msra.mxu0 %v1099
    %1101 = vmatprep.subr.mxu0 0.0
    %v1102 = vand.u32 %v599, 4294901760
    %v1103 = vsub.f32 %v599, %v1102
    %v1104 = vand.u32 %v1103, 4294901760
    %1105 = vmatpush1.msra.mxu0 %v1104
    %1106 = vmatprep.subr.mxu0 0.0
    %v1107 = vand.u32 %v600, 4294901760
    %v1108 = vsub.f32 %v600, %v1107
    %v1109 = vand.u32 %v1108, 4294901760
    %1110 = vmatpush1.msra.mxu0 %v1109
    %1111 = vmatprep.subr.mxu0 0.0
    %v1112 = vand.u32 %v601, 4294901760
    %v1113 = vsub.f32 %v601, %v1112
    %v1114 = vand.u32 %v1113, 4294901760
    %1115 = vmatpush1.msra.mxu0 %v1114
    %1116 = vmatprep.subr.mxu0 0.0
    %v1117 = vand.u32 %v602, 4294901760
    %v1118 = vsub.f32 %v602, %v1117
    %v1119 = vand.u32 %v1118, 4294901760
    %1120 = vmatpush1.msra.mxu0 %v1119
    %1121 = vmatprep.subr.mxu0 0.0
    %v1122 = vand.u32 %v603, 4294901760
    %v1123 = vsub.f32 %v603, %v1122
    %v1124 = vand.u32 %v1123, 4294901760
    %1125 = vmatpush1.msra.mxu0 %v1124
    %1126 = vmatprep.subr.mxu0 0.0
    %1127 = vmatpush1.msra.mxu0 0.0
    %1128 = vmatprep.subr.mxu0 0.0
    %1129 = vmatpush1.msra.mxu0 0.0
    %1130 = vmatprep.subr.mxu0 0.0
    %1131 = vmatpush1.msra.mxu0 0.0
    %1132 = vmatprep.subr.mxu0 0.0
    %1133 = vmatpush1.msra.mxu0 0.0
    %1134 = vmatprep.subr.mxu0 0.0
    %1135 = vmatpush1.msra.mxu0 0.0
    %1136 = vmatprep.subr.mxu0 0.0
    %1137 = vmatpush1.msra.mxu0 0.0
    %1138 = vmatprep.subr.mxu0 0.0
    %1139 = vmatpush1.msra.mxu0 0.0
    %1140 = vmatprep.subr.mxu0 0.0
    %1141 = vmatpush1.msra.mxu0 0.0
    %1142 = vmatprep.subr.mxu0 0.0
    %1143 = vmatpush1.msra.mxu0 0.0
    %1144 = vmatprep.subr.mxu0 0.0
    %1145 = vmatpush1.msra.mxu0 0.0
    %1146 = vmatprep.subr.mxu0 0.0
    %1147 = vmatpush1.msra.mxu0 0.0
    %1148 = vmatprep.subr.mxu0 0.0
    %1149 = vmatpush1.msra.mxu0 0.0
    %1150 = vmatprep.subr.mxu0 0.0
    %1151 = vmatpush1.msra.mxu0 0.0
    %1152 = vmatprep.subr.mxu0 0.0
    %1153 = vmatpush1.msra.mxu0 0.0
    %1154 = vmatprep.subr.mxu0 0.0
    %1155 = vmatpush1.msra.mxu0 0.0
    %1156 = vmatprep.subr.mxu0 0.0
    %1157 = vmatpush1.msra.mxu0 0.0
    %1158 = vmatprep.mubr.f32.mxu0 0.0
    %v1159 = vand.u32 %v587, 4294901760
    %1160 = vmatmul.mubr.f32.gmra.mrb[0].mxu0 %v1159
    %v1161 = vpop.f32.mrb[0].mxu0
    %v1162 = vadd.f32 %v1043, %v1161
    %v1163 = vpop.f32.mrb[0].mxu0
    %1164 = vdwg.mxu0
    %1165 = vmatprep.subr.mxu0 0.0
    %v1166 = vand.u32 %v588, 4294901760
    %1167 = vmatpush1.msra.mxu0 %v1166
    %1168 = vmatprep.subr.mxu0 0.0
    %v1169 = vand.u32 %v589, 4294901760
    %1170 = vmatpush1.msra.mxu0 %v1169
    %1171 = vmatprep.subr.mxu0 0.0
    %v1172 = vand.u32 %v590, 4294901760
    %1173 = vmatpush1.msra.mxu0 %v1172
    %1174 = vmatprep.subr.mxu0 0.0
    %v1175 = vand.u32 %v591, 4294901760
    %1176 = vmatpush1.msra.mxu0 %v1175
    %1177 = vmatprep.subr.mxu0 0.0
    %v1178 = vand.u32 %v592, 4294901760
    %1179 = vmatpush1.msra.mxu0 %v1178
    %1180 = vmatprep.subr.mxu0 0.0
    %v1181 = vand.u32 %v593, 4294901760
    %1182 = vmatpush1.msra.mxu0 %v1181
    %1183 = vmatprep.subr.mxu0 0.0
    %v1184 = vand.u32 %v594, 4294901760
    %1185 = vmatpush1.msra.mxu0 %v1184
    %1186 = vmatprep.subr.mxu0 0.0
    %v1187 = vand.u32 %v595, 4294901760
    %1188 = vmatpush1.msra.mxu0 %v1187
    %1189 = vmatprep.subr.mxu0 0.0
    %v1190 = vand.u32 %v596, 4294901760
    %1191 = vmatpush1.msra.mxu0 %v1190
    %1192 = vmatprep.subr.mxu0 0.0
    %v1193 = vand.u32 %v597, 4294901760
    %1194 = vmatpush1.msra.mxu0 %v1193
    %1195 = vmatprep.subr.mxu0 0.0
    %v1196 = vand.u32 %v598, 4294901760
    %1197 = vmatpush1.msra.mxu0 %v1196
    %1198 = vmatprep.subr.mxu0 0.0
    %v1199 = vand.u32 %v599, 4294901760
    %1200 = vmatpush1.msra.mxu0 %v1199
    %1201 = vmatprep.subr.mxu0 0.0
    %v1202 = vand.u32 %v600, 4294901760
    %1203 = vmatpush1.msra.mxu0 %v1202
    %1204 = vmatprep.subr.mxu0 0.0
    %v1205 = vand.u32 %v601, 4294901760
    %1206 = vmatpush1.msra.mxu0 %v1205
    %1207 = vmatprep.subr.mxu0 0.0
    %v1208 = vand.u32 %v602, 4294901760
    %1209 = vmatpush1.msra.mxu0 %v1208
    %1210 = vmatprep.subr.mxu0 0.0
    %v1211 = vand.u32 %v603, 4294901760
    %1212 = vmatpush1.msra.mxu0 %v1211
    %1213 = vmatprep.subr.mxu0 0.0
    %1214 = vmatpush1.msra.mxu0 0.0
    %1215 = vmatprep.subr.mxu0 0.0
    %1216 = vmatpush1.msra.mxu0 0.0
    %1217 = vmatprep.subr.mxu0 0.0
    %1218 = vmatpush1.msra.mxu0 0.0
    %1219 = vmatprep.subr.mxu0 0.0
    %1220 = vmatpush1.msra.mxu0 0.0
    %1221 = vmatprep.subr.mxu0 0.0
    %1222 = vmatpush1.msra.mxu0 0.0
    %1223 = vmatprep.subr.mxu0 0.0
    %1224 = vmatpush1.msra.mxu0 0.0
    %1225 = vmatprep.subr.mxu0 0.0
    %1226 = vmatpush1.msra.mxu0 0.0
    %1227 = vmatprep.subr.mxu0 0.0
    %1228 = vmatpush1.msra.mxu0 0.0
    %1229 = vmatprep.subr.mxu0 0.0
    %1230 = vmatpush1.msra.mxu0 0.0
    %1231 = vmatprep.subr.mxu0 0.0
    %1232 = vmatpush1.msra.mxu0 0.0
    %1233 = vmatprep.subr.mxu0 0.0
    %1234 = vmatpush1.msra.mxu0 0.0
    %1235 = vmatprep.subr.mxu0 0.0
    %1236 = vmatpush1.msra.mxu0 0.0
    %1237 = vmatprep.subr.mxu0 0.0
    %1238 = vmatpush1.msra.mxu0 0.0
    %1239 = vmatprep.subr.mxu0 0.0
    %1240 = vmatpush1.msra.mxu0 0.0
    %1241 = vmatprep.subr.mxu0 0.0
    %1242 = vmatpush1.msra.mxu0 0.0
    %1243 = vmatprep.subr.mxu0 0.0
    %1244 = vmatpush1.msra.mxu0 0.0
    %1245 = vmatprep.mubr.f32.mxu0 0.0
    %v1246 = vand.u32 %v587, 4294901760
    %1247 = vmatmul.mubr.f32.gmra.mrb[0].mxu0 %v1246
    %v1248 = vpop.f32.mrb[0].mxu0
    %v1249 = vadd.f32 %v1162, %v1248
    %v1250 = vpop.f32.mrb[0].mxu0
    %1251 = vdwg.mxu0
    %v1252 = vmax.f32 %v1249, 0.0
    %v1253 = vld [vmem:[%s5] sm:$0xff]
    %v1254 = vld [vmem:[%s5 + $0x8] sm:$0xff]
    %v1255 = vld [vmem:[%s5 + $0x10] sm:$0xff]
    %v1256 = vld [vmem:[%s5 + $0x18] sm:$0xff]
    %v1257 = vld [vmem:[%s5 + $0x20] sm:$0xff]
    %v1258 = vld [vmem:[%s5 + $0x28] sm:$0xff]
    %v1259 = vld [vmem:[%s5 + $0x30] sm:$0xff]
    %v1260 = vld [vmem:[%s5 + $0x38] sm:$0xff]
    %v1261 = vld [vmem:[%s5 + $0x40] sm:$0xff]
    %v1262 = vld [vmem:[%s5 + $0x48] sm:$0xff]
    %v1263 = vld [vmem:[%s5 + $0x50] sm:$0xff]
    %v1264 = vld [vmem:[%s5 + $0x58] sm:$0xff]
    %v1265 = vld [vmem:[%s5 + $0x60] sm:$0xff]
    %v1266 = vld [vmem:[%s5 + $0x68] sm:$0xff]
    %v1267 = vld [vmem:[%s5 + $0x70] sm:$0xff]
    %v1268 = vld [vmem:[%s5 + $0x78] sm:$0xff]
    %v1269 = vld [vmem:[%s6] sm:$0x1]
    %v1271 = vlaneseq
    %v1272 = vshrl.u32 %v1271, 7
    %v1273 = vsub.s32 0, %v1272
    %v1274 = vrot.slane %v1269, %v1273
    %1276 = vmatprep.subr.mxu0 0.0
    %v1277 = vand.u32 %v1253, 4294901760
    %1278 = vmatpush1.msra.mxu0 %v1277
    %1279 = vmatprep.subr.mxu0 0.0
    %v1280 = vand.u32 %v1254, 4294901760
    %1281 = vmatpush1.msra.mxu0 %v1280
    %1282 = vmatprep.subr.mxu0 0.0
    %v1283 = vand.u32 %v1255, 4294901760
    %1284 = vmatpush1.msra.mxu0 %v1283
    %1285 = vmatprep.subr.mxu0 0.0
    %v1286 = vand.u32 %v1256, 4294901760
    %1287 = vmatpush1.msra.mxu0 %v1286
    %1288 = vmatprep.subr.mxu0 0.0
    %v1289 = vand.u32 %v1257, 4294901760
    %1290 = vmatpush1.msra.mxu0 %v1289
    %1291 = vmatprep.subr.mxu0 0.0
    %v1292 = vand.u32 %v1258, 4294901760
    %1293 = vmatpush1.msra.mxu0 %v1292
    %1294 = vmatprep.subr.mxu0 0.0
    %v1295 = vand.u32 %v1259, 4294901760
    %1296 = vmatpush1.msra.mxu0 %v1295
    %1297 = vmatprep.subr.mxu0 0.0
    %v1298 = vand.u32 %v1260, 4294901760
    %1299 = vmatpush1.msra.mxu0 %v1298
    %1300 = vmatprep.subr.mxu0 0.0
    %v1301 = vand.u32 %v1261, 4294901760
    %1302 = vmatpush1.msra.mxu0 %v1301
    %1303 = vmatprep.subr.mxu0 0.0
    %v1304 = vand.u32 %v1262, 4294901760
    %1305 = vmatpush1.msra.mxu0 %v1304
    %1306 = vmatprep.subr.mxu0 0.0
    %v1307 = vand.u32 %v1263, 4294901760
    %1308 = vmatpush1.msra.mxu0 %v1307
    %1309 = vmatprep.subr.mxu0 0.0
    %v1310 = vand.u32 %v1264, 4294901760
    %1311 = vmatpush1.msra.mxu0 %v1310
    %1312 = vmatprep.subr.mxu0 0.0
    %v1313 = vand.u32 %v1265, 4294901760
    %1314 = vmatpush1.msra.mxu0 %v1313
    %1315 = vmatprep.subr.mxu0 0.0
    %v1316 = vand.u32 %v1266, 4294901760
    %1317 = vmatpush1.msra.mxu0 %v1316
    %1318 = vmatprep.subr.mxu0 0.0
    %v1319 = vand.u32 %v1267, 4294901760
    %1320 = vmatpush1.msra.mxu0 %v1319
    %1321 = vmatprep.subr.mxu0 0.0
    %v1322 = vand.u32 %v1268, 4294901760
    %1323 = vmatpush1.msra.mxu0 %v1322
    %1324 = vmatprep.subr.mxu0 0.0
    %1325 = vmatpush1.msra.mxu0 0.0
    %1326 = vmatprep.subr.mxu0 0.0
    %1327 = vmatpush1.msra.mxu0 0.0
    %1328 = vmatprep.subr.mxu0 0.0
    %1329 = vmatpush1.msra.mxu0 0.0
    %1330 = vmatprep.subr.mxu0 0.0
    %1331 = vmatpush1.msra.mxu0 0.0
    %1332 = vmatprep.subr.mxu0 0.0
    %1333 = vmatpush1.msra.mxu0 0.0
    %1334 = vmatprep.subr.mxu0 0.0
    %1335 = vmatpush1.msra.mxu0 0.0
    %1336 = vmatprep.subr.mxu0 0.0
    %1337 = vmatpush1.msra.mxu0 0.0
    %1338 = vmatprep.subr.mxu0 0.0
    %1339 = vmatpush1.msra.mxu0 0.0
    %1340 = vmatprep.subr.mxu0 0.0
    %1341 = vmatpush1.msra.mxu0 0.0
    %1342 = vmatprep.subr.mxu0 0.0
    %1343 = vmatpush1.msra.mxu0 0.0
    %1344 = vmatprep.subr.mxu0 0.0
    %1345 = vmatpush1.msra.mxu0 0.0
    %1346 = vmatprep.subr.mxu0 0.0
    %1347 = vmatpush1.msra.mxu0 0.0
    %1348 = vmatprep.subr.mxu0 0.0
    %1349 = vmatpush1.msra.mxu0 0.0
    %1350 = vmatprep.subr.mxu0 0.0
    %1351 = vmatpush1.msra.mxu0 0.0
    %1352 = vmatprep.subr.mxu0 0.0
    %1353 = vmatpush1.msra.mxu0 0.0
    %1354 = vmatprep.subr.mxu0 0.0
    %1355 = vmatpush1.msra.mxu0 0.0
    %1356 = vmatprep.mubr.f32.mxu0 0.0
    %v1357 = vand.u32 %v1252, 4294901760
    %v1358 = vsub.f32 %v1252, %v1357
    %v1359 = vand.u32 %v1358, 4294901760
    %v1360 = vsub.f32 %v1358, %v1359
    %v1361 = vand.u32 %v1360, 4294901760
    %1362 = vmatmul.mubr.f32.gmra.mrb[0].mxu0 %v1361
    %v1363 = vpop.f32.mrb[0].mxu0
    %v1364 = vadd.f32 %v1274, %v1363
    %v1365 = vpop.f32.mrb[0].mxu0
    %1366 = vdwg.mxu0
    %1367 = vmatprep.subr.mxu0 0.0
    %v1368 = vand.u32 %v1253, 4294901760
    %v1369 = vsub.f32 %v1253, %v1368
    %v1370 = vand.u32 %v1369, 4294901760
    %v1371 = vsub.f32 %v1369, %v1370
    %v1372 = vand.u32 %v1371, 4294901760
    %1373 = vmatpush1.msra.mxu0 %v1372
    %1374 = vmatprep.subr.mxu0 0.0
    %v1375 = vand.u32 %v1254, 4294901760
    %v1376 = vsub.f32 %v1254, %v1375
    %v1377 = vand.u32 %v1376, 4294901760
    %v1378 = vsub.f32 %v1376, %v1377
    %v1379 = vand.u32 %v1378, 4294901760
    %1380 = vmatpush1.msra.mxu0 %v1379
    %1381 = vmatprep.subr.mxu0 0.0
    %v1382 = vand.u32 %v1255, 4294901760
    %v1383 = vsub.f32 %v1255, %v1382
    %v1384 = vand.u32 %v1383, 4294901760
    %v1385 = vsub.f32 %v1383, %v1384
    %v1386 = vand.u32 %v1385, 4294901760
    %1387 = vmatpush1.msra.mxu0 %v1386
    %1388 = vmatprep.subr.mxu0 0.0
    %v1389 = vand.u32 %v1256, 4294901760
    %v1390 = vsub.f32 %v1256, %v1389
    %v1391 = vand.u32 %v1390, 4294901760
    %v1392 = vsub.f32 %v1390, %v1391
    %v1393 = vand.u32 %v1392, 4294901760
    %1394 = vmatpush1.msra.mxu0 %v1393
    %1395 = vmatprep.subr.mxu0 0.0
    %v1396 = vand.u32 %v1257, 4294901760
    %v1397 = vsub.f32 %v1257, %v1396
    %v1398 = vand.u32 %v1397, 4294901760
    %v1399 = vsub.f32 %v1397, %v1398
    %v1400 = vand.u32 %v1399, 4294901760
    %1401 = vmatpush1.msra.mxu0 %v1400
    %1402 = vmatprep.subr.mxu0 0.0
    %v1403 = vand.u32 %v1258, 4294901760
    %v1404 = vsub.f32 %v1258, %v1403
    %v1405 = vand.u32 %v1404, 4294901760
    %v1406 = vsub.f32 %v1404, %v1405
    %v1407 = vand.u32 %v1406, 4294901760
    %1408 = vmatpush1.msra.mxu0 %v1407
    %1409 = vmatprep.subr.mxu0 0.0
    %v1410 = vand.u32 %v1259, 4294901760
    %v1411 = vsub.f32 %v1259, %v1410
    %v1412 = vand.u32 %v1411, 4294901760
    %v1413 = vsub.f32 %v1411, %v1412
    %v1414 = vand.u32 %v1413, 4294901760
    %1415 = vmatpush1.msra.mxu0 %v1414
    %1416 = vmatprep.subr.mxu0 0.0
    %v1417 = vand.u32 %v1260, 4294901760
    %v1418 = vsub.f32 %v1260, %v1417
    %v1419 = vand.u32 %v1418, 4294901760
    %v1420 = vsub.f32 %v1418, %v1419
    %v1421 = vand.u32 %v1420, 4294901760
    %1422 = vmatpush1.msra.mxu0 %v1421
    %1423 = vmatprep.subr.mxu0 0.0
    %v1424 = vand.u32 %v1261, 4294901760
    %v1425 = vsub.f32 %v1261, %v1424
    %v1426 = vand.u32 %v1425, 4294901760
    %v1427 = vsub.f32 %v1425, %v1426
    %v1428 = vand.u32 %v1427, 4294901760
    %1429 = vmatpush1.msra.mxu0 %v1428
    %1430 = vmatprep.subr.mxu0 0.0
    %v1431 = vand.u32 %v1262, 4294901760
    %v1432 = vsub.f32 %v1262, %v1431
    %v1433 = vand.u32 %v1432, 4294901760
    %v1434 = vsub.f32 %v1432, %v1433
    %v1435 = vand.u32 %v1434, 4294901760
    %1436 = vmatpush1.msra.mxu0 %v1435
    %1437 = vmatprep.subr.mxu0 0.0
    %v1438 = vand.u32 %v1263, 4294901760
    %v1439 = vsub.f32 %v1263, %v1438
    %v1440 = vand.u32 %v1439, 4294901760
    %v1441 = vsub.f32 %v1439, %v1440
    %v1442 = vand.u32 %v1441, 4294901760
    %1443 = vmatpush1.msra.mxu0 %v1442
    %1444 = vmatprep.subr.mxu0 0.0
    %v1445 = vand.u32 %v1264, 4294901760
    %v1446 = vsub.f32 %v1264, %v1445
    %v1447 = vand.u32 %v1446, 4294901760
    %v1448 = vsub.f32 %v1446, %v1447
    %v1449 = vand.u32 %v1448, 4294901760
    %1450 = vmatpush1.msra.mxu0 %v1449
    %1451 = vmatprep.subr.mxu0 0.0
    %v1452 = vand.u32 %v1265, 4294901760
    %v1453 = vsub.f32 %v1265, %v1452
    %v1454 = vand.u32 %v1453, 4294901760
    %v1455 = vsub.f32 %v1453, %v1454
    %v1456 = vand.u32 %v1455, 4294901760
    %1457 = vmatpush1.msra.mxu0 %v1456
    %1458 = vmatprep.subr.mxu0 0.0
    %v1459 = vand.u32 %v1266, 4294901760
    %v1460 = vsub.f32 %v1266, %v1459
    %v1461 = vand.u32 %v1460, 4294901760
    %v1462 = vsub.f32 %v1460, %v1461
    %v1463 = vand.u32 %v1462, 4294901760
    %1464 = vmatpush1.msra.mxu0 %v1463
    %1465 = vmatprep.subr.mxu0 0.0
    %v1466 = vand.u32 %v1267, 4294901760
    %v1467 = vsub.f32 %v1267, %v1466
    %v1468 = vand.u32 %v1467, 4294901760
    %v1469 = vsub.f32 %v1467, %v1468
    %v1470 = vand.u32 %v1469, 4294901760
    %1471 = vmatpush1.msra.mxu0 %v1470
    %1472 = vmatprep.subr.mxu0 0.0
    %v1473 = vand.u32 %v1268, 4294901760
    %v1474 = vsub.f32 %v1268, %v1473
    %v1475 = vand.u32 %v1474, 4294901760
    %v1476 = vsub.f32 %v1474, %v1475
    %v1477 = vand.u32 %v1476, 4294901760
    %1478 = vmatpush1.msra.mxu0 %v1477
    %1479 = vmatprep.subr.mxu0 0.0
    %1480 = vmatpush1.msra.mxu0 0.0
    %1481 = vmatprep.subr.mxu0 0.0
    %1482 = vmatpush1.msra.mxu0 0.0
    %1483 = vmatprep.subr.mxu0 0.0
    %1484 = vmatpush1.msra.mxu0 0.0
    %1485 = vmatprep.subr.mxu0 0.0
    %1486 = vmatpush1.msra.mxu0 0.0
    %1487 = vmatprep.subr.mxu0 0.0
    %1488 = vmatpush1.msra.mxu0 0.0
    %1489 = vmatprep.subr.mxu0 0.0
    %1490 = vmatpush1.msra.mxu0 0.0
    %1491 = vmatprep.subr.mxu0 0.0
    %1492 = vmatpush1.msra.mxu0 0.0
    %1493 = vmatprep.subr.mxu0 0.0
    %1494 = vmatpush1.msra.mxu0 0.0
    %1495 = vmatprep.subr.mxu0 0.0
    %1496 = vmatpush1.msra.mxu0 0.0
    %1497 = vmatprep.subr.mxu0 0.0
    %1498 = vmatpush1.msra.mxu0 0.0
    %1499 = vmatprep.subr.mxu0 0.0
    %1500 = vmatpush1.msra.mxu0 0.0
    %1501 = vmatprep.subr.mxu0 0.0
    %1502 = vmatpush1.msra.mxu0 0.0
    %1503 = vmatprep.subr.mxu0 0.0
    %1504 = vmatpush1.msra.mxu0 0.0
    %1505 = vmatprep.subr.mxu0 0.0
    %1506 = vmatpush1.msra.mxu0 0.0
    %1507 = vmatprep.subr.mxu0 0.0
    %1508 = vmatpush1.msra.mxu0 0.0
    %1509 = vmatprep.subr.mxu0 0.0
    %1510 = vmatpush1.msra.mxu0 0.0
    %1511 = vmatprep.mubr.f32.mxu0 0.0
    %v1512 = vand.u32 %v1252, 4294901760
    %1513 = vmatmul.mubr.f32.gmra.mrb[0].mxu0 %v1512
    %v1514 = vpop.f32.mrb[0].mxu0
    %v1515 = vadd.f32 %v1364, %v1514
    %v1516 = vpop.f32.mrb[0].mxu0
    %1517 = vdwg.mxu0
    %1518 = vmatprep.subr.mxu0 0.0
    %v1519 = vand.u32 %v1253, 4294901760
    %v1520 = vsub.f32 %v1253, %v1519
    %1521 = vmatpush1.msra.mxu0 %v1520
    %1522 = vmatprep.subr.mxu0 0.0
    %v1523 = vand.u32 %v1254, 4294901760
    %v1524 = vsub.f32 %v1254, %v1523
    %1525 = vmatpush1.msra.mxu0 %v1524
    %1526 = vmatprep.subr.mxu0 0.0
    %v1527 = vand.u32 %v1255, 4294901760
    %v1528 = vsub.f32 %v1255, %v1527
    %1529 = vmatpush1.msra.mxu0 %v1528
    %1530 = vmatprep.subr.mxu0 0.0
    %v1531 = vand.u32 %v1256, 4294901760
    %v1532 = vsub.f32 %v1256, %v1531
    %1533 = vmatpush1.msra.mxu0 %v1532
    %1534 = vmatprep.subr.mxu0 0.0
    %v1535 = vand.u32 %v1257, 4294901760
    %v1536 = vsub.f32 %v1257, %v1535
    %1537 = vmatpush1.msra.mxu0 %v1536
    %1538 = vmatprep.subr.mxu0 0.0
    %v1539 = vand.u32 %v1258, 4294901760
    %v1540 = vsub.f32 %v1258, %v1539
    %1541 = vmatpush1.msra.mxu0 %v1540
    %1542 = vmatprep.subr.mxu0 0.0
    %v1543 = vand.u32 %v1259, 4294901760
    %v1544 = vsub.f32 %v1259, %v1543
    %1545 = vmatpush1.msra.mxu0 %v1544
    %1546 = vmatprep.subr.mxu0 0.0
    %v1547 = vand.u32 %v1260, 4294901760
    %v1548 = vsub.f32 %v1260, %v1547
    %1549 = vmatpush1.msra.mxu0 %v1548
    %1550 = vmatprep.subr.mxu0 0.0
    %v1551 = vand.u32 %v1261, 4294901760
    %v1552 = vsub.f32 %v1261, %v1551
    %1553 = vmatpush1.msra.mxu0 %v1552
    %1554 = vmatprep.subr.mxu0 0.0
    %v1555 = vand.u32 %v1262, 4294901760
    %v1556 = vsub.f32 %v1262, %v1555
    %1557 = vmatpush1.msra.mxu0 %v1556
    %1558 = vmatprep.subr.mxu0 0.0
    %v1559 = vand.u32 %v1263, 4294901760
    %v1560 = vsub.f32 %v1263, %v1559
    %1561 = vmatpush1.msra.mxu0 %v1560
    %1562 = vmatprep.subr.mxu0 0.0
    %v1563 = vand.u32 %v1264, 4294901760
    %v1564 = vsub.f32 %v1264, %v1563
    %1565 = vmatpush1.msra.mxu0 %v1564
    %1566 = vmatprep.subr.mxu0 0.0
    %v1567 = vand.u32 %v1265, 4294901760
    %v1568 = vsub.f32 %v1265, %v1567
    %1569 = vmatpush1.msra.mxu0 %v1568
    %1570 = vmatprep.subr.mxu0 0.0
    %v1571 = vand.u32 %v1266, 4294901760
    %v1572 = vsub.f32 %v1266, %v1571
    %1573 = vmatpush1.msra.mxu0 %v1572
    %1574 = vmatprep.subr.mxu0 0.0
    %v1575 = vand.u32 %v1267, 4294901760
    %v1576 = vsub.f32 %v1267, %v1575
    %1577 = vmatpush1.msra.mxu0 %v1576
    %1578 = vmatprep.subr.mxu0 0.0
    %v1579 = vand.u32 %v1268, 4294901760
    %v1580 = vsub.f32 %v1268, %v1579
    %1581 = vmatpush1.msra.mxu0 %v1580
    %1582 = vmatprep.subr.mxu0 0.0
    %1583 = vmatpush1.msra.mxu0 0.0
    %1584 = vmatprep.subr.mxu0 0.0
    %1585 = vmatpush1.msra.mxu0 0.0
    %1586 = vmatprep.subr.mxu0 0.0
    %1587 = vmatpush1.msra.mxu0 0.0
    %1588 = vmatprep.subr.mxu0 0.0
    %1589 = vmatpush1.msra.mxu0 0.0
    %1590 = vmatprep.subr.mxu0 0.0
    %1591 = vmatpush1.msra.mxu0 0.0
    %1592 = vmatprep.subr.mxu0 0.0
    %1593 = vmatpush1.msra.mxu0 0.0
    %1594 = vmatprep.subr.mxu0 0.0
    %1595 = vmatpush1.msra.mxu0 0.0
    %1596 = vmatprep.subr.mxu0 0.0
    %1597 = vmatpush1.msra.mxu0 0.0
    %1598 = vmatprep.subr.mxu0 0.0
    %1599 = vmatpush1.msra.mxu0 0.0
    %1600 = vmatprep.subr.mxu0 0.0
    %1601 = vmatpush1.msra.mxu0 0.0
    %1602 = vmatprep.subr.mxu0 0.0
    %1603 = vmatpush1.msra.mxu0 0.0
    %1604 = vmatprep.subr.mxu0 0.0
    %1605 = vmatpush1.msra.mxu0 0.0
    %1606 = vmatprep.subr.mxu0 0.0
    %1607 = vmatpush1.msra.mxu0 0.0
    %1608 = vmatprep.subr.mxu0 0.0
    %1609 = vmatpush1.msra.mxu0 0.0
    %1610 = vmatprep.subr.mxu0 0.0
    %1611 = vmatpush1.msra.mxu0 0.0
    %1612 = vmatprep.subr.mxu0 0.0
    %1613 = vmatpush1.msra.mxu0 0.0
    %1614 = vmatprep.mubr.f32.mxu0 0.0
    %v1615 = vand.u32 %v1252, 4294901760
    %v1616 = vsub.f32 %v1252, %v1615
    %1617 = vmatmul.mubr.f32.gmra.mrb[0].mxu0 %v1616
    %v1618 = vpop.f32.mrb[0].mxu0
    %v1619 = vadd.f32 %v1515, %v1618
    %v1620 = vpop.f32.mrb[0].mxu0
    %1621 = vdwg.mxu0
    %1622 = vmatprep.subr.mxu0 0.0
    %v1623 = vand.u32 %v1253, 4294901760
    %1624 = vmatpush1.msra.mxu0 %v1623
    %1625 = vmatprep.subr.mxu0 0.0
    %v1626 = vand.u32 %v1254, 4294901760
    %1627 = vmatpush1.msra.mxu0 %v1626
    %1628 = vmatprep.subr.mxu0 0.0
    %v1629 = vand.u32 %v1255, 4294901760
    %1630 = vmatpush1.msra.mxu0 %v1629
    %1631 = vmatprep.subr.mxu0 0.0
    %v1632 = vand.u32 %v1256, 4294901760
    %1633 = vmatpush1.msra.mxu0 %v1632
    %1634 = vmatprep.subr.mxu0 0.0
    %v1635 = vand.u32 %v1257, 4294901760
    %1636 = vmatpush1.msra.mxu0 %v1635
    %1637 = vmatprep.subr.mxu0 0.0
    %v1638 = vand.u32 %v1258, 4294901760
    %1639 = vmatpush1.msra.mxu0 %v1638
    %1640 = vmatprep.subr.mxu0 0.0
    %v1641 = vand.u32 %v1259, 4294901760
    %1642 = vmatpush1.msra.mxu0 %v1641
    %1643 = vmatprep.subr.mxu0 0.0
    %v1644 = vand.u32 %v1260, 4294901760
    %1645 = vmatpush1.msra.mxu0 %v1644
    %1646 = vmatprep.subr.mxu0 0.0
    %v1647 = vand.u32 %v1261, 4294901760
    %1648 = vmatpush1.msra.mxu0 %v1647
    %1649 = vmatprep.subr.mxu0 0.0
    %v1650 = vand.u32 %v1262, 4294901760
    %1651 = vmatpush1.msra.mxu0 %v1650
    %1652 = vmatprep.subr.mxu0 0.0
    %v1653 = vand.u32 %v1263, 4294901760
    %1654 = vmatpush1.msra.mxu0 %v1653
    %1655 = vmatprep.subr.mxu0 0.0
    %v1656 = vand.u32 %v1264, 4294901760
    %1657 = vmatpush1.msra.mxu0 %v1656
    %1658 = vmatprep.subr.mxu0 0.0
    %v1659 = vand.u32 %v1265, 4294901760
    %1660 = vmatpush1.msra.mxu0 %v1659
    %1661 = vmatprep.subr.mxu0 0.0
    %v1662 = vand.u32 %v1266, 4294901760
    %1663 = vmatpush1.msra.mxu0 %v1662
    %1664 = vmatprep.subr.mxu0 0.0
    %v1665 = vand.u32 %v1267, 4294901760
    %1666 = vmatpush1.msra.mxu0 %v1665
    %1667 = vmatprep.subr.mxu0 0.0
    %v1668 = vand.u32 %v1268, 4294901760
    %1669 = vmatpush1.msra.mxu0 %v1668
    %1670 = vmatprep.subr.mxu0 0.0
    %1671 = vmatpush1.msra.mxu0 0.0
    %1672 = vmatprep.subr.mxu0 0.0
    %1673 = vmatpush1.msra.mxu0 0.0
    %1674 = vmatprep.subr.mxu0 0.0
    %1675 = vmatpush1.msra.mxu0 0.0
    %1676 = vmatprep.subr.mxu0 0.0
    %1677 = vmatpush1.msra.mxu0 0.0
    %1678 = vmatprep.subr.mxu0 0.0
    %1679 = vmatpush1.msra.mxu0 0.0
    %1680 = vmatprep.subr.mxu0 0.0
    %1681 = vmatpush1.msra.mxu0 0.0
    %1682 = vmatprep.subr.mxu0 0.0
    %1683 = vmatpush1.msra.mxu0 0.0
    %1684 = vmatprep.subr.mxu0 0.0
    %1685 = vmatpush1.msra.mxu0 0.0
    %1686 = vmatprep.subr.mxu0 0.0
    %1687 = vmatpush1.msra.mxu0 0.0
    %1688 = vmatprep.subr.mxu0 0.0
    %1689 = vmatpush1.msra.mxu0 0.0
    %1690 = vmatprep.subr.mxu0 0.0
    %1691 = vmatpush1.msra.mxu0 0.0
    %1692 = vmatprep.subr.mxu0 0.0
    %1693 = vmatpush1.msra.mxu0 0.0
    %1694 = vmatprep.subr.mxu0 0.0
    %1695 = vmatpush1.msra.mxu0 0.0
    %1696 = vmatprep.subr.mxu0 0.0
    %1697 = vmatpush1.msra.mxu0 0.0
    %1698 = vmatprep.subr.mxu0 0.0
    %1699 = vmatpush1.msra.mxu0 0.0
    %1700 = vmatprep.subr.mxu0 0.0
    %1701 = vmatpush1.msra.mxu0 0.0
    %1702 = vmatprep.mubr.f32.mxu0 0.0
    %v1703 = vand.u32 %v1252, 4294901760
    %v1704 = vsub.f32 %v1252, %v1703
    %v1705 = vand.u32 %v1704, 4294901760
    %1706 = vmatmul.mubr.f32.gmra.mrb[0].mxu0 %v1705
    %v1707 = vpop.f32.mrb[0].mxu0
    %v1708 = vadd.f32 %v1619, %v1707
    %v1709 = vpop.f32.mrb[0].mxu0
    %1710 = vdwg.mxu0
    %1711 = vmatprep.subr.mxu0 0.0
    %v1712 = vand.u32 %v1253, 4294901760
    %v1713 = vsub.f32 %v1253, %v1712
    %v1714 = vand.u32 %v1713, 4294901760
    %1715 = vmatpush1.msra.mxu0 %v1714
    %1716 = vmatprep.subr.mxu0 0.0
    %v1717 = vand.u32 %v1254, 4294901760
    %v1718 = vsub.f32 %v1254, %v1717
    %v1719 = vand.u32 %v1718, 4294901760
    %1720 = vmatpush1.msra.mxu0 %v1719
    %1721 = vmatprep.subr.mxu0 0.0
    %v1722 = vand.u32 %v1255, 4294901760
    %v1723 = vsub.f32 %v1255, %v1722
    %v1724 = vand.u32 %v1723, 4294901760
    %1725 = vmatpush1.msra.mxu0 %v1724
    %1726 = vmatprep.subr.mxu0 0.0
    %v1727 = vand.u32 %v1256, 4294901760
    %v1728 = vsub.f32 %v1256, %v1727
    %v1729 = vand.u32 %v1728, 4294901760
    %1730 = vmatpush1.msra.mxu0 %v1729
    %1731 = vmatprep.subr.mxu0 0.0
    %v1732 = vand.u32 %v1257, 4294901760
    %v1733 = vsub.f32 %v1257, %v1732
    %v1734 = vand.u32 %v1733, 4294901760
    %1735 = vmatpush1.msra.mxu0 %v1734
    %1736 = vmatprep.subr.mxu0 0.0
    %v1737 = vand.u32 %v1258, 4294901760
    %v1738 = vsub.f32 %v1258, %v1737
    %v1739 = vand.u32 %v1738, 4294901760
    %1740 = vmatpush1.msra.mxu0 %v1739
    %1741 = vmatprep.subr.mxu0 0.0
    %v1742 = vand.u32 %v1259, 4294901760
    %v1743 = vsub.f32 %v1259, %v1742
    %v1744 = vand.u32 %v1743, 4294901760
    %1745 = vmatpush1.msra.mxu0 %v1744
    %1746 = vmatprep.subr.mxu0 0.0
    %v1747 = vand.u32 %v1260, 4294901760
    %v1748 = vsub.f32 %v1260, %v1747
    %v1749 = vand.u32 %v1748, 4294901760
    %1750 = vmatpush1.msra.mxu0 %v1749
    %1751 = vmatprep.subr.mxu0 0.0
    %v1752 = vand.u32 %v1261, 4294901760
    %v1753 = vsub.f32 %v1261, %v1752
    %v1754 = vand.u32 %v1753, 4294901760
    %1755 = vmatpush1.msra.mxu0 %v1754
    %1756 = vmatprep.subr.mxu0 0.0
    %v1757 = vand.u32 %v1262, 4294901760
    %v1758 = vsub.f32 %v1262, %v1757
    %v1759 = vand.u32 %v1758, 4294901760
    %1760 = vmatpush1.msra.mxu0 %v1759
    %1761 = vmatprep.subr.mxu0 0.0
    %v1762 = vand.u32 %v1263, 4294901760
    %v1763 = vsub.f32 %v1263, %v1762
    %v1764 = vand.u32 %v1763, 4294901760
    %1765 = vmatpush1.msra.mxu0 %v1764
    %1766 = vmatprep.subr.mxu0 0.0
    %v1767 = vand.u32 %v1264, 4294901760
    %v1768 = vsub.f32 %v1264, %v1767
    %v1769 = vand.u32 %v1768, 4294901760
    %1770 = vmatpush1.msra.mxu0 %v1769
    %1771 = vmatprep.subr.mxu0 0.0
    %v1772 = vand.u32 %v1265, 4294901760
    %v1773 = vsub.f32 %v1265, %v1772
    %v1774 = vand.u32 %v1773, 4294901760
    %1775 = vmatpush1.msra.mxu0 %v1774
    %1776 = vmatprep.subr.mxu0 0.0
    %v1777 = vand.u32 %v1266, 4294901760
    %v1778 = vsub.f32 %v1266, %v1777
    %v1779 = vand.u32 %v1778, 4294901760
    %1780 = vmatpush1.msra.mxu0 %v1779
    %1781 = vmatprep.subr.mxu0 0.0
    %v1782 = vand.u32 %v1267, 4294901760
    %v1783 = vsub.f32 %v1267, %v1782
    %v1784 = vand.u32 %v1783, 4294901760
    %1785 = vmatpush1.msra.mxu0 %v1784
    %1786 = vmatprep.subr.mxu0 0.0
    %v1787 = vand.u32 %v1268, 4294901760
    %v1788 = vsub.f32 %v1268, %v1787
    %v1789 = vand.u32 %v1788, 4294901760
    %1790 = vmatpush1.msra.mxu0 %v1789
    %1791 = vmatprep.subr.mxu0 0.0
    %1792 = vmatpush1.msra.mxu0 0.0
    %1793 = vmatprep.subr.mxu0 0.0
    %1794 = vmatpush1.msra.mxu0 0.0
    %1795 = vmatprep.subr.mxu0 0.0
    %1796 = vmatpush1.msra.mxu0 0.0
    %1797 = vmatprep.subr.mxu0 0.0
    %1798 = vmatpush1.msra.mxu0 0.0
    %1799 = vmatprep.subr.mxu0 0.0
    %1800 = vmatpush1.msra.mxu0 0.0
    %1801 = vmatprep.subr.mxu0 0.0
    %1802 = vmatpush1.msra.mxu0 0.0
    %1803 = vmatprep.subr.mxu0 0.0
    %1804 = vmatpush1.msra.mxu0 0.0
    %1805 = vmatprep.subr.mxu0 0.0
    %1806 = vmatpush1.msra.mxu0 0.0
    %1807 = vmatprep.subr.mxu0 0.0
    %1808 = vmatpush1.msra.mxu0 0.0
    %1809 = vmatprep.subr.mxu0 0.0
    %1810 = vmatpush1.msra.mxu0 0.0
    %1811 = vmatprep.subr.mxu0 0.0
    %1812 = vmatpush1.msra.mxu0 0.0
    %1813 = vmatprep.subr.mxu0 0.0
    %1814 = vmatpush1.msra.mxu0 0.0
    %1815 = vmatprep.subr.mxu0 0.0
    %1816 = vmatpush1.msra.mxu0 0.0
    %1817 = vmatprep.subr.mxu0 0.0
    %1818 = vmatpush1.msra.mxu0 0.0
    %1819 = vmatprep.subr.mxu0 0.0
    %1820 = vmatpush1.msra.mxu0 0.0
    %1821 = vmatprep.subr.mxu0 0.0
    %1822 = vmatpush1.msra.mxu0 0.0
    %1823 = vmatprep.mubr.f32.mxu0 0.0
    %v1824 = vand.u32 %v1252, 4294901760
    %1825 = vmatmul.mubr.f32.gmra.mrb[0].mxu0 %v1824
    %v1826 = vpop.f32.mrb[0].mxu0
    %v1827 = vadd.f32 %v1708, %v1826
    %v1828 = vpop.f32.mrb[0].mxu0
    %1829 = vdwg.mxu0
    %1830 = vmatprep.subr.mxu0 0.0
    %v1831 = vand.u32 %v1253, 4294901760
    %1832 = vmatpush1.msra.mxu0 %v1831
    %1833 = vmatprep.subr.mxu0 0.0
    %v1834 = vand.u32 %v1254, 4294901760
    %1835 = vmatpush1.msra.mxu0 %v1834
    %1836 = vmatprep.subr.mxu0 0.0
    %v1837 = vand.u32 %v1255, 4294901760
    %1838 = vmatpush1.msra.mxu0 %v1837
    %1839 = vmatprep.subr.mxu0 0.0
    %v1840 = vand.u32 %v1256, 4294901760
    %1841 = vmatpush1.msra.mxu0 %v1840
    %1842 = vmatprep.subr.mxu0 0.0
    %v1843 = vand.u32 %v1257, 4294901760
    %1844 = vmatpush1.msra.mxu0 %v1843
    %1845 = vmatprep.subr.mxu0 0.0
    %v1846 = vand.u32 %v1258, 4294901760
    %1847 = vmatpush1.msra.mxu0 %v1846
    %1848 = vmatprep.subr.mxu0 0.0
    %v1849 = vand.u32 %v1259, 4294901760
    %1850 = vmatpush1.msra.mxu0 %v1849
    %1851 = vmatprep.subr.mxu0 0.0
    %v1852 = vand.u32 %v1260, 4294901760
    %1853 = vmatpush1.msra.mxu0 %v1852
    %1854 = vmatprep.subr.mxu0 0.0
    %v1855 = vand.u32 %v1261, 4294901760
    %1856 = vmatpush1.msra.mxu0 %v1855
    %1857 = vmatprep.subr.mxu0 0.0
    %v1858 = vand.u32 %v1262, 4294901760
    %1859 = vmatpush1.msra.mxu0 %v1858
    %1860 = vmatprep.subr.mxu0 0.0
    %v1861 = vand.u32 %v1263, 4294901760
    %1862 = vmatpush1.msra.mxu0 %v1861
    %1863 = vmatprep.subr.mxu0 0.0
    %v1864 = vand.u32 %v1264, 4294901760
    %1865 = vmatpush1.msra.mxu0 %v1864
    %1866 = vmatprep.subr.mxu0 0.0
    %v1867 = vand.u32 %v1265, 4294901760
    %1868 = vmatpush1.msra.mxu0 %v1867
    %1869 = vmatprep.subr.mxu0 0.0
    %v1870 = vand.u32 %v1266, 4294901760
    %1871 = vmatpush1.msra.mxu0 %v1870
    %1872 = vmatprep.subr.mxu0 0.0
    %v1873 = vand.u32 %v1267, 4294901760
    %1874 = vmatpush1.msra.mxu0 %v1873
    %1875 = vmatprep.subr.mxu0 0.0
    %v1876 = vand.u32 %v1268, 4294901760
    %1877 = vmatpush1.msra.mxu0 %v1876
    %1878 = vmatprep.subr.mxu0 0.0
    %1879 = vmatpush1.msra.mxu0 0.0
    %1880 = vmatprep.subr.mxu0 0.0
    %1881 = vmatpush1.msra.mxu0 0.0
    %1882 = vmatprep.subr.mxu0 0.0
    %1883 = vmatpush1.msra.mxu0 0.0
    %1884 = vmatprep.subr.mxu0 0.0
    %1885 = vmatpush1.msra.mxu0 0.0
    %1886 = vmatprep.subr.mxu0 0.0
    %1887 = vmatpush1.msra.mxu0 0.0
    %1888 = vmatprep.subr.mxu0 0.0
    %1889 = vmatpush1.msra.mxu0 0.0
    %1890 = vmatprep.subr.mxu0 0.0
    %1891 = vmatpush1.msra.mxu0 0.0
    %1892 = vmatprep.subr.mxu0 0.0
    %1893 = vmatpush1.msra.mxu0 0.0
    %1894 = vmatprep.subr.mxu0 0.0
    %1895 = vmatpush1.msra.mxu0 0.0
    %1896 = vmatprep.subr.mxu0 0.0
    %1897 = vmatpush1.msra.mxu0 0.0
    %1898 = vmatprep.subr.mxu0 0.0
    %1899 = vmatpush1.msra.mxu0 0.0
    %1900 = vmatprep.subr.mxu0 0.0
    %1901 = vmatpush1.msra.mxu0 0.0
    %1902 = vmatprep.subr.mxu0 0.0
    %1903 = vmatpush1.msra.mxu0 0.0
    %1904 = vmatprep.subr.mxu0 0.0
    %1905 = vmatpush1.msra.mxu0 0.0
    %1906 = vmatprep.subr.mxu0 0.0
    %1907 = vmatpush1.msra.mxu0 0.0
    %1908 = vmatprep.subr.mxu0 0.0
    %1909 = vmatpush1.msra.mxu0 0.0
    %1910 = vmatprep.mubr.f32.mxu0 0.0
    %v1911 = vand.u32 %v1252, 4294901760
    %1912 = vmatmul.mubr.f32.gmra.mrb[0].mxu0 %v1911
    %v1913 = vpop.f32.mrb[0].mxu0
    %v1914 = vadd.f32 %v1827, %v1913
    %v1915 = vpop.f32.mrb[0].mxu0
    %1916 = vdwg.mxu0
    %vm1917 = vcmask 31744
    %1918 = vst.msk [vmem:[%s7] sm:$0xff] %vm1917, %v1914
    // Predicated region
    $region34: #{agent_network_forward.1} parent=1 // pred_check
      _
    $region35: #{agent_network_forward.1} parent=1 // pred_check_branch
      %1920 = sbr.rel (0) target = $region37
    $region36: #{agent_network_forward.1} parent=1 // pred_region
      _
    $region37: #{agent_network_forward.1} parent=1 // pred_fallthru
      _
    // Predicated region
    $region38: #{agent_network_forward.1} parent=1 // pred_check
      _
    $region39: #{agent_network_forward.1} parent=1 // pred_check_branch
      %1922 = sbr.rel (0) target = $region41
    $region40: #{agent_network_forward.1} parent=1 // pred_region
      _
    $region41: #{agent_network_forward.1} parent=1 // pred_fallthru
      _
    %1923 = vsyncpa [#allocation3], 1

</llo_original>
